<compile_context>
chip_gen: v6e
topology: v6e:2x2x1
jax: 0.10.0
libtpu: 0.0.40
codegen_flags: <defaults>
</compile_context>

<pallas_src>
import jax
import jax.numpy as jnp
from jax import lax
from jax.experimental import pallas as pl
from jax.experimental.pallas import tpu as pltpu

# ---------------------------------------------------------------- model dims
VOCAB = 176
INPUT_SIZE = 88
HIDDEN_SIZE = 16
OUTPUT_SIZE = 88
NUM_LAYERS = 2
BATCH = 2
SEQ = 8

H4 = 4 * HIDDEN_SIZE                  # 64: fused gate width, order [i|f|g|o]

# ---------------- packed-weight blob layout (rows of a (160, 128) f32 blob) --
_R_WIH0 = 0                           # (88, 64)  W_ih^T  layer 0
_R_WHH0 = _R_WIH0 + INPUT_SIZE        # (16, 64)  W_hh^T  layer 0
_R_WIH1 = _R_WHH0 + HIDDEN_SIZE       # (16, 64)  W_ih^T  layer 1
_R_WHH1 = _R_WIH1 + HIDDEN_SIZE       # (16, 64)  W_hh^T  layer 1
_R_FCW  = _R_WHH1 + HIDDEN_SIZE       # (16, 88)  fc_w^T
_R_B0   = _R_FCW + HIDDEN_SIZE        # (1, 64)   b_ih + b_hh, layer 0
_R_B1   = _R_B0 + 1                   # (1, 64)   layer 1
_R_FCB  = _R_B1 + 1                   # (1, 88)   fc bias
_BLOB_ROWS = 160                      # padded to a multiple of 8 sublanes
_BLOB_COLS = 128                      # lane-dense


# ------------------------------------------------------------- fused kernel
def _lstm_layer(xp_all, w_hh):
    """One LSTM layer, recurrence fully unrolled.

    xp_all: (SEQ*BATCH, 4H) hoisted input projection incl. bias, time-major.
    w_hh:   (H, 4H) recurrent weights, gate columns ordered [i|f|g|o].
    Returns the list of SEQ hidden states, each (BATCH, H).
    """
    H = HIDDEN_SIZE
    h = jnp.zeros((BATCH, H), jnp.float32)
    c = jnp.zeros((BATCH, H), jnp.float32)
    hs = []
    for t in range(SEQ):
        xp_t = xp_all[t * BATCH:(t + 1) * BATCH, :]            # (B, 4H)
        pre = xp_t + jnp.dot(h, w_hh, preferred_element_type=jnp.float32)
        sig = jax.nn.sigmoid(pre)            # one whole-vector EUP activation
        i_g = sig[:, 0 * H:1 * H]
        f_g = sig[:, 1 * H:2 * H]
        o_g = sig[:, 3 * H:4 * H]
        g_g = jnp.tanh(pre[:, 2 * H:3 * H])
        c = f_g * c + i_g * g_g
        h = o_g * jnp.tanh(c)
        hs.append(h)
    return hs


def fused_lstm_kernel(idx_ref, embed_ref, wb_ref, o_ref):
    # ---- carve the packed weight blob once (hoisted out of every loop) ----
    wih0 = wb_ref[_R_WIH0:_R_WIH0 + INPUT_SIZE, 0:H4]          # (88, 64)
    whh0 = wb_ref[_R_WHH0:_R_WHH0 + HIDDEN_SIZE, 0:H4]         # (16, 64)
    wih1 = wb_ref[_R_WIH1:_R_WIH1 + HIDDEN_SIZE, 0:H4]         # (16, 64)
    whh1 = wb_ref[_R_WHH1:_R_WHH1 + HIDDEN_SIZE, 0:H4]         # (16, 64)
    fcw = wb_ref[_R_FCW:_R_FCW + HIDDEN_SIZE, 0:OUTPUT_SIZE]   # (16, 88)
    b0 = wb_ref[_R_B0:_R_B0 + 1, 0:H4]                         # (1, 64)
    b1 = wb_ref[_R_B1:_R_B1 + 1, 0:H4]                         # (1, 64)
    fcb = wb_ref[_R_FCB:_R_FCB + 1, 0:OUTPUT_SIZE]             # (1, 88)

    # ---- embedding gather, built time-major inside the kernel --------------
    rows = []
    for t in range(SEQ):
        for b in range(BATCH):
            tok = idx_ref[b * SEQ + t]                         # SMEM scalar
            rows.append(embed_ref[pl.ds(tok, 1), :])           # (1, 88)
    x_all = jnp.concatenate(rows, axis=0)                      # (T*B, 88)

    # ---- layer 0: one fused input projection for the whole sequence --------
    xp0 = jnp.dot(x_all, wih0, preferred_element_type=jnp.float32) + b0
    hs0 = _lstm_layer(xp0, whh0)

    # ---- layer 1: input projection batched over all time steps -------------
    h0_all = jnp.concatenate(hs0, axis=0)                      # (T*B, 16)
    xp1 = jnp.dot(h0_all, wih1, preferred_element_type=jnp.float32) + b1
    hs1 = _lstm_layer(xp1, whh1)

    # ---- final Linear on the last hidden state (single HBM store) ----------
    o_ref[...] = (jnp.dot(hs1[-1], fcw, preferred_element_type=jnp.float32)
                  + fcb)


def _full_spec(shape):
    n = len(shape)
    return pl.BlockSpec(shape, lambda: (0,) * n)


# -------------------------------------------------------------- forward pass
@jax.jit
def lstm_forward(kp, idx):
    # x.int() from the PyTorch forward -> int32 token ids, flattened
    # batch-major so idx_flat[b*SEQ + t] == idx[b, t].  Only pre-kernel glue.
    idx_flat = idx.astype(jnp.int32).reshape(-1)
    return pl.pallas_call(
        fused_lstm_kernel,
        out_shape=jax.ShapeDtypeStruct((BATCH, OUTPUT_SIZE), jnp.float32),
        grid=(),
        in_specs=[
            pl.BlockSpec(memory_space=pltpu.MemorySpace.SMEM),  # token ids
            _full_spec(kp["embed"].shape),                      # (176, 88)
            _full_spec(kp["blob"].shape),                       # (160, 128)
        ],
        out_specs=_full_spec((BATCH, OUTPUT_SIZE)),
    )(idx_flat, kp["embed"], kp["blob"])


# ---------------------------------------------------------------- parameters
def init_params(key):
    ks = jax.random.split(key, 3 + 4 * NUM_LAYERS)
    params = {}
    # nn.Embedding(176, input_size): N(0, 1)
    params["embed"] = jax.random.normal(ks[0], (VOCAB, INPUT_SIZE), jnp.float32)

    # nn.LSTM: uniform(-1/sqrt(H), 1/sqrt(H)), gate order [i, f, g, o]
    bound = 1.0 / jnp.sqrt(jnp.float32(HIDDEN_SIZE))
    layers = []
    for l in range(NUM_LAYERS):
        d_in = INPUT_SIZE if l == 0 else HIDDEN_SIZE
        k0, k1, k2, k3 = ks[1 + 4 * l: 5 + 4 * l]
        w_ih = jax.random.uniform(k0, (4 * HIDDEN_SIZE, d_in), jnp.float32,
                                  -bound, bound)
        w_hh = jax.random.uniform(k1, (4 * HIDDEN_SIZE, HIDDEN_SIZE),
                                  jnp.float32, -bound, bound)
        b_ih = jax.random.uniform(k2, (4 * HIDDEN_SIZE,), jnp.float32,
                                  -bound, bound)
        b_hh = jax.random.uniform(k3, (4 * HIDDEN_SIZE,), jnp.float32,
                                  -bound, bound)
        layers.append({"w_ih": w_ih, "w_hh": w_hh, "b": b_ih + b_hh})
    params["lstm"] = layers

    # nn.Linear(hidden, output)
    kw, kb = ks[1 + 4 * NUM_LAYERS], ks[2 + 4 * NUM_LAYERS]
    params["fc_w"] = jax.random.uniform(kw, (OUTPUT_SIZE, HIDDEN_SIZE),
                                        jnp.float32, -bound, bound)
    params["fc_b"] = jax.random.uniform(kb, (OUTPUT_SIZE,), jnp.float32,
                                        -bound, bound)
    return params


def prepare_kernel_params(params):
    """Pack all weights/biases into one lane-dense f32 blob (single DMA)."""
    H = HIDDEN_SIZE
    l0, l1 = params["lstm"]
    blob = jnp.zeros((_BLOB_ROWS, _BLOB_COLS), jnp.float32)
    blob = blob.at[_R_WIH0:_R_WIH0 + INPUT_SIZE, 0:H4].set(l0["w_ih"].T)
    blob = blob.at[_R_WHH0:_R_WHH0 + H, 0:H4].set(l0["w_hh"].T)
    blob = blob.at[_R_WIH1:_R_WIH1 + H, 0:H4].set(l1["w_ih"].T)
    blob = blob.at[_R_WHH1:_R_WHH1 + H, 0:H4].set(l1["w_hh"].T)
    blob = blob.at[_R_FCW:_R_FCW + H, 0:OUTPUT_SIZE].set(params["fc_w"].T)
    blob = blob.at[_R_B0, 0:H4].set(l0["b"])
    blob = blob.at[_R_B1, 0:H4].set(l1["b"])
    blob = blob.at[_R_FCB, 0:OUTPUT_SIZE].set(params["fc_b"])
    return {"embed": params["embed"], "blob": blob}


# ------------------------------------------------------- pure-JAX reference
def lstm_forward_ref(params, idx):
    x = jnp.take(params["embed"], idx.astype(jnp.int32), axis=0)  # (B, T, D)
    h_seq = jnp.transpose(x, (1, 0, 2))                           # (T, B, D)
    B, H = idx.shape[0], HIDDEN_SIZE
    for layer in params["lstm"]:
        w_ih_t = layer["w_ih"].T
        w_hh_t = layer["w_hh"].T
        b = layer["b"][None, :]

        def step(carry, x_t, w_ih_t=w_ih_t, w_hh_t=w_hh_t, b=b):
            h, c = carry
            gates = x_t @ w_ih_t + h @ w_hh_t + b
            i = jax.nn.sigmoid(gates[:, 0:H])
            f = jax.nn.sigmoid(gates[:, H:2 * H])
            g = jnp.tanh(gates[:, 2 * H:3 * H])
            o = jax.nn.sigmoid(gates[:, 3 * H:4 * H])
            c = f * c + i * g
            h = o * jnp.tanh(c)
            return (h, c), h

        init = (jnp.zeros((B, H), jnp.float32),
                jnp.zeros((B, H), jnp.float32))
        _, h_seq = lax.scan(step, init, h_seq)
    return h_seq[-1] @ params["fc_w"].T + params["fc_b"][None, :]


if __name__ == "__main__":
    key = jax.random.PRNGKey(0)
    k_param, k_idx = jax.random.split(key)
    params = init_params(k_param)
    kparams = prepare_kernel_params(params)
    idx = jax.random.randint(k_idx, (BATCH, SEQ), 0, VOCAB, dtype=jnp.int32)

    out = jax.block_until_ready(lstm_forward(kparams, idx))

    ref = lstm_forward_ref(params, idx)
    assert out.shape == (BATCH, OUTPUT_SIZE)
    assert jnp.allclose(out, ref, atol=1e-4, rtol=1e-4), \
        float(jnp.max(jnp.abs(out - ref)))

    print("KERNEL_OK")
</pallas_src>

<mosaic_0001>
module attributes {stable_mosaic.version = 11 : i64} {
  func.func @fused_lstm_kernel(%arg0: memref<16xi32, #tpu.memory_space<smem>>, %arg1: memref<176x88xf32, #tpu.memory_space<vmem>>, %arg2: memref<160x128xf32, #tpu.memory_space<vmem>>, %arg3: memref<2x88xf32, #tpu.memory_space<vmem>>) attributes {dimension_semantics = [], scalar_prefetch = 0 : i64, scratch_operands = 0 : i64, tpu.core_type = #tpu.core_type<tc>} {
    %c0 = arith.constant 0 : index
    %c0_0 = arith.constant 0 : index
    %0 = vector.load %arg2[%c0, %c0_0] : memref<160x128xf32, #tpu.memory_space<vmem>>, vector<88x64xf32>
    %c88 = arith.constant 88 : index
    %c0_1 = arith.constant 0 : index
    %1 = vector.load %arg2[%c88, %c0_1] : memref<160x128xf32, #tpu.memory_space<vmem>>, vector<16x64xf32>
    %c104 = arith.constant 104 : index
    %c0_2 = arith.constant 0 : index
    %2 = vector.load %arg2[%c104, %c0_2] : memref<160x128xf32, #tpu.memory_space<vmem>>, vector<16x64xf32>
    %c120 = arith.constant 120 : index
    %c0_3 = arith.constant 0 : index
    %3 = vector.load %arg2[%c120, %c0_3] : memref<160x128xf32, #tpu.memory_space<vmem>>, vector<16x64xf32>
    %c136 = arith.constant 136 : index
    %c0_4 = arith.constant 0 : index
    %4 = vector.load %arg2[%c136, %c0_4] : memref<160x128xf32, #tpu.memory_space<vmem>>, vector<16x88xf32>
    %c152 = arith.constant 152 : index
    %c0_5 = arith.constant 0 : index
    %5 = vector.load %arg2[%c152, %c0_5] : memref<160x128xf32, #tpu.memory_space<vmem>>, vector<1x64xf32>
    %c153 = arith.constant 153 : index
    %c0_6 = arith.constant 0 : index
    %6 = vector.load %arg2[%c153, %c0_6] : memref<160x128xf32, #tpu.memory_space<vmem>>, vector<1x64xf32>
    %c154 = arith.constant 154 : index
    %c0_7 = arith.constant 0 : index
    %7 = vector.load %arg2[%c154, %c0_7] : memref<160x128xf32, #tpu.memory_space<vmem>>, vector<1x88xf32>
    %c0_8 = arith.constant 0 : index
    %8 = memref.load %arg0[%c0_8] : memref<16xi32, #tpu.memory_space<smem>>
    %9 = arith.index_cast %8 : i32 to index
    %c0_9 = arith.constant 0 : index
    %10 = vector.load %arg1[%9, %c0_9] : memref<176x88xf32, #tpu.memory_space<vmem>>, vector<1x88xf32>
    %c8 = arith.constant 8 : index
    %11 = memref.load %arg0[%c8] : memref<16xi32, #tpu.memory_space<smem>>
    %12 = arith.index_cast %11 : i32 to index
    %c0_10 = arith.constant 0 : index
    %13 = vector.load %arg1[%12, %c0_10] : memref<176x88xf32, #tpu.memory_space<vmem>>, vector<1x88xf32>
    %c1 = arith.constant 1 : index
    %14 = memref.load %arg0[%c1] : memref<16xi32, #tpu.memory_space<smem>>
    %15 = arith.index_cast %14 : i32 to index
    %c0_11 = arith.constant 0 : index
    %16 = vector.load %arg1[%15, %c0_11] : memref<176x88xf32, #tpu.memory_space<vmem>>, vector<1x88xf32>
    %c9 = arith.constant 9 : index
    %17 = memref.load %arg0[%c9] : memref<16xi32, #tpu.memory_space<smem>>
    %18 = arith.index_cast %17 : i32 to index
    %c0_12 = arith.constant 0 : index
    %19 = vector.load %arg1[%18, %c0_12] : memref<176x88xf32, #tpu.memory_space<vmem>>, vector<1x88xf32>
    %c2 = arith.constant 2 : index
    %20 = memref.load %arg0[%c2] : memref<16xi32, #tpu.memory_space<smem>>
    %21 = arith.index_cast %20 : i32 to index
    %c0_13 = arith.constant 0 : index
    %22 = vector.load %arg1[%21, %c0_13] : memref<176x88xf32, #tpu.memory_space<vmem>>, vector<1x88xf32>
    %c10 = arith.constant 10 : index
    %23 = memref.load %arg0[%c10] : memref<16xi32, #tpu.memory_space<smem>>
    %24 = arith.index_cast %23 : i32 to index
    %c0_14 = arith.constant 0 : index
    %25 = vector.load %arg1[%24, %c0_14] : memref<176x88xf32, #tpu.memory_space<vmem>>, vector<1x88xf32>
    %c3 = arith.constant 3 : index
    %26 = memref.load %arg0[%c3] : memref<16xi32, #tpu.memory_space<smem>>
    %27 = arith.index_cast %26 : i32 to index
    %c0_15 = arith.constant 0 : index
    %28 = vector.load %arg1[%27, %c0_15] : memref<176x88xf32, #tpu.memory_space<vmem>>, vector<1x88xf32>
    %c11 = arith.constant 11 : index
    %29 = memref.load %arg0[%c11] : memref<16xi32, #tpu.memory_space<smem>>
    %30 = arith.index_cast %29 : i32 to index
    %c0_16 = arith.constant 0 : index
    %31 = vector.load %arg1[%30, %c0_16] : memref<176x88xf32, #tpu.memory_space<vmem>>, vector<1x88xf32>
    %c4 = arith.constant 4 : index
    %32 = memref.load %arg0[%c4] : memref<16xi32, #tpu.memory_space<smem>>
    %33 = arith.index_cast %32 : i32 to index
    %c0_17 = arith.constant 0 : index
    %34 = vector.load %arg1[%33, %c0_17] : memref<176x88xf32, #tpu.memory_space<vmem>>, vector<1x88xf32>
    %c12 = arith.constant 12 : index
    %35 = memref.load %arg0[%c12] : memref<16xi32, #tpu.memory_space<smem>>
    %36 = arith.index_cast %35 : i32 to index
    %c0_18 = arith.constant 0 : index
    %37 = vector.load %arg1[%36, %c0_18] : memref<176x88xf32, #tpu.memory_space<vmem>>, vector<1x88xf32>
    %c5 = arith.constant 5 : index
    %38 = memref.load %arg0[%c5] : memref<16xi32, #tpu.memory_space<smem>>
    %39 = arith.index_cast %38 : i32 to index
    %c0_19 = arith.constant 0 : index
    %40 = vector.load %arg1[%39, %c0_19] : memref<176x88xf32, #tpu.memory_space<vmem>>, vector<1x88xf32>
    %c13 = arith.constant 13 : index
    %41 = memref.load %arg0[%c13] : memref<16xi32, #tpu.memory_space<smem>>
    %42 = arith.index_cast %41 : i32 to index
    %c0_20 = arith.constant 0 : index
    %43 = vector.load %arg1[%42, %c0_20] : memref<176x88xf32, #tpu.memory_space<vmem>>, vector<1x88xf32>
    %c6 = arith.constant 6 : index
    %44 = memref.load %arg0[%c6] : memref<16xi32, #tpu.memory_space<smem>>
    %45 = arith.index_cast %44 : i32 to index
    %c0_21 = arith.constant 0 : index
    %46 = vector.load %arg1[%45, %c0_21] : memref<176x88xf32, #tpu.memory_space<vmem>>, vector<1x88xf32>
    %c14 = arith.constant 14 : index
    %47 = memref.load %arg0[%c14] : memref<16xi32, #tpu.memory_space<smem>>
    %48 = arith.index_cast %47 : i32 to index
    %c0_22 = arith.constant 0 : index
    %49 = vector.load %arg1[%48, %c0_22] : memref<176x88xf32, #tpu.memory_space<vmem>>, vector<1x88xf32>
    %c7 = arith.constant 7 : index
    %50 = memref.load %arg0[%c7] : memref<16xi32, #tpu.memory_space<smem>>
    %51 = arith.index_cast %50 : i32 to index
    %c0_23 = arith.constant 0 : index
    %52 = vector.load %arg1[%51, %c0_23] : memref<176x88xf32, #tpu.memory_space<vmem>>, vector<1x88xf32>
    %c15 = arith.constant 15 : index
    %53 = memref.load %arg0[%c15] : memref<16xi32, #tpu.memory_space<smem>>
    %54 = arith.index_cast %53 : i32 to index
    %c0_24 = arith.constant 0 : index
    %55 = vector.load %arg1[%54, %c0_24] : memref<176x88xf32, #tpu.memory_space<vmem>>, vector<1x88xf32>
    %56 = tpu.concatenate %10, %13, %16, %19, %22, %25, %28, %31, %34, %37, %40, %43, %46, %49, %52, %55 in 0 : vector<1x88xf32>, vector<1x88xf32>, vector<1x88xf32>, vector<1x88xf32>, vector<1x88xf32>, vector<1x88xf32>, vector<1x88xf32>, vector<1x88xf32>, vector<1x88xf32>, vector<1x88xf32>, vector<1x88xf32>, vector<1x88xf32>, vector<1x88xf32>, vector<1x88xf32>, vector<1x88xf32>, vector<1x88xf32> -> vector<16x88xf32>
    %cst = arith.constant dense<0.000000e+00> : vector<16x64xf32>
    %57 = tpu.matmul %56, %0, %cst {dimension_numbers = #tpu.dot_dimension_numbers<[1], [0], [0], [1], [0, 0, 1, 1], [], []>} : vector<16x88xf32>, vector<88x64xf32>, vector<16x64xf32> -> vector<16x64xf32>
    %58 = vector.broadcast %5 : vector<1x64xf32> to vector<16x64xf32>
    %59 = arith.addf %57, %58 : vector<16x64xf32>
    %cst_25 = arith.constant 0.000000e+00 : f32
    %60 = vector.broadcast %cst_25 : f32 to vector<2x16xf32>
    %cst_26 = arith.constant 0.000000e+00 : f32
    %61 = vector.broadcast %cst_26 : f32 to vector<2x16xf32>
    %62 = vector.extract_strided_slice %59 {offsets = [0, 0], sizes = [2, 64], strides = [1, 1]} : vector<16x64xf32> to vector<2x64xf32>
    %cst_27 = arith.constant dense<0.000000e+00> : vector<2x64xf32>
    %63 = tpu.matmul %60, %1, %cst_27 {dimension_numbers = #tpu.dot_dimension_numbers<[1], [0], [0], [1], [0, 0, 1, 1], [], []>} : vector<2x16xf32>, vector<16x64xf32>, vector<2x64xf32> -> vector<2x64xf32>
    %64 = arith.addf %62, %63 : vector<2x64xf32>
    %65 = arith.negf %64 : vector<2x64xf32>
    %66 = math.exp %65 : vector<2x64xf32>
    %cst_28 = arith.constant 1.000000e+00 : f32
    %67 = vector.broadcast %cst_28 : f32 to vector<2x64xf32>
    %68 = arith.addf %67, %66 : vector<2x64xf32>
    %69 = arith.divf %67, %68 : vector<2x64xf32>
    %70 = vector.extract_strided_slice %69 {offsets = [0, 0], sizes = [2, 16], strides = [1, 1]} : vector<2x64xf32> to vector<2x16xf32>
    %71 = vector.extract_strided_slice %69 {offsets = [0, 16], sizes = [2, 16], strides = [1, 1]} : vector<2x64xf32> to vector<2x16xf32>
    %72 = vector.extract_strided_slice %69 {offsets = [0, 48], sizes = [2, 16], strides = [1, 1]} : vector<2x64xf32> to vector<2x16xf32>
    %73 = vector.extract_strided_slice %64 {offsets = [0, 32], sizes = [2, 16], strides = [1, 1]} : vector<2x64xf32> to vector<2x16xf32>
    %74 = math.tanh %73 : vector<2x16xf32>
    %75 = arith.mulf %71, %61 : vector<2x16xf32>
    %76 = arith.mulf %70, %74 : vector<2x16xf32>
    %77 = arith.addf %75, %76 : vector<2x16xf32>
    %78 = math.tanh %77 : vector<2x16xf32>
    %79 = arith.mulf %72, %78 : vector<2x16xf32>
    %80 = vector.extract_strided_slice %59 {offsets = [2, 0], sizes = [2, 64], strides = [1, 1]} : vector<16x64xf32> to vector<2x64xf32>
    %cst_29 = arith.constant dense<0.000000e+00> : vector<2x64xf32>
    %81 = tpu.matmul %79, %1, %cst_29 {dimension_numbers = #tpu.dot_dimension_numbers<[1], [0], [0], [1], [0, 0, 1, 1], [], []>} : vector<2x16xf32>, vector<16x64xf32>, vector<2x64xf32> -> vector<2x64xf32>
    %82 = arith.addf %80, %81 : vector<2x64xf32>
    %83 = arith.negf %82 : vector<2x64xf32>
    %84 = math.exp %83 : vector<2x64xf32>
    %cst_30 = arith.constant 1.000000e+00 : f32
    %85 = vector.broadcast %cst_30 : f32 to vector<2x64xf32>
    %86 = arith.addf %85, %84 : vector<2x64xf32>
    %87 = arith.divf %85, %86 : vector<2x64xf32>
    %88 = vector.extract_strided_slice %87 {offsets = [0, 0], sizes = [2, 16], strides = [1, 1]} : vector<2x64xf32> to vector<2x16xf32>
    %89 = vector.extract_strided_slice %87 {offsets = [0, 16], sizes = [2, 16], strides = [1, 1]} : vector<2x64xf32> to vector<2x16xf32>
    %90 = vector.extract_strided_slice %87 {offsets = [0, 48], sizes = [2, 16], strides = [1, 1]} : vector<2x64xf32> to vector<2x16xf32>
    %91 = vector.extract_strided_slice %82 {offsets = [0, 32], sizes = [2, 16], strides = [1, 1]} : vector<2x64xf32> to vector<2x16xf32>
    %92 = math.tanh %91 : vector<2x16xf32>
    %93 = arith.mulf %89, %77 : vector<2x16xf32>
    %94 = arith.mulf %88, %92 : vector<2x16xf32>
    %95 = arith.addf %93, %94 : vector<2x16xf32>
    %96 = math.tanh %95 : vector<2x16xf32>
    %97 = arith.mulf %90, %96 : vector<2x16xf32>
    %98 = vector.extract_strided_slice %59 {offsets = [4, 0], sizes = [2, 64], strides = [1, 1]} : vector<16x64xf32> to vector<2x64xf32>
    %cst_31 = arith.constant dense<0.000000e+00> : vector<2x64xf32>
    %99 = tpu.matmul %97, %1, %cst_31 {dimension_numbers = #tpu.dot_dimension_numbers<[1], [0], [0], [1], [0, 0, 1, 1], [], []>} : vector<2x16xf32>, vector<16x64xf32>, vector<2x64xf32> -> vector<2x64xf32>
    %100 = arith.addf %98, %99 : vector<2x64xf32>
    %101 = arith.negf %100 : vector<2x64xf32>
    %102 = math.exp %101 : vector<2x64xf32>
    %cst_32 = arith.constant 1.000000e+00 : f32
    %103 = vector.broadcast %cst_32 : f32 to vector<2x64xf32>
    %104 = arith.addf %103, %102 : vector<2x64xf32>
    %105 = arith.divf %103, %104 : vector<2x64xf32>
    %106 = vector.extract_strided_slice %105 {offsets = [0, 0], sizes = [2, 16], strides = [1, 1]} : vector<2x64xf32> to vector<2x16xf32>
    %107 = vector.extract_strided_slice %105 {offsets = [0, 16], sizes = [2, 16], strides = [1, 1]} : vector<2x64xf32> to vector<2x16xf32>
    %108 = vector.extract_strided_slice %105 {offsets = [0, 48], sizes = [2, 16], strides = [1, 1]} : vector<2x64xf32> to vector<2x16xf32>
    %109 = vector.extract_strided_slice %100 {offsets = [0, 32], sizes = [2, 16], strides = [1, 1]} : vector<2x64xf32> to vector<2x16xf32>
    %110 = math.tanh %109 : vector<2x16xf32>
    %111 = arith.mulf %107, %95 : vector<2x16xf32>
    %112 = arith.mulf %106, %110 : vector<2x16xf32>
    %113 = arith.addf %111, %112 : vector<2x16xf32>
    %114 = math.tanh %113 : vector<2x16xf32>
    %115 = arith.mulf %108, %114 : vector<2x16xf32>
    %116 = vector.extract_strided_slice %59 {offsets = [6, 0], sizes = [2, 64], strides = [1, 1]} : vector<16x64xf32> to vector<2x64xf32>
    %cst_33 = arith.constant dense<0.000000e+00> : vector<2x64xf32>
    %117 = tpu.matmul %115, %1, %cst_33 {dimension_numbers = #tpu.dot_dimension_numbers<[1], [0], [0], [1], [0, 0, 1, 1], [], []>} : vector<2x16xf32>, vector<16x64xf32>, vector<2x64xf32> -> vector<2x64xf32>
    %118 = arith.addf %116, %117 : vector<2x64xf32>
    %119 = arith.negf %118 : vector<2x64xf32>
    %120 = math.exp %119 : vector<2x64xf32>
    %cst_34 = arith.constant 1.000000e+00 : f32
    %121 = vector.broadcast %cst_34 : f32 to vector<2x64xf32>
    %122 = arith.addf %121, %120 : vector<2x64xf32>
    %123 = arith.divf %121, %122 : vector<2x64xf32>
    %124 = vector.extract_strided_slice %123 {offsets = [0, 0], sizes = [2, 16], strides = [1, 1]} : vector<2x64xf32> to vector<2x16xf32>
    %125 = vector.extract_strided_slice %123 {offsets = [0, 16], sizes = [2, 16], strides = [1, 1]} : vector<2x64xf32> to vector<2x16xf32>
    %126 = vector.extract_strided_slice %123 {offsets = [0, 48], sizes = [2, 16], strides = [1, 1]} : vector<2x64xf32> to vector<2x16xf32>
    %127 = vector.extract_strided_slice %118 {offsets = [0, 32], sizes = [2, 16], strides = [1, 1]} : vector<2x64xf32> to vector<2x16xf32>
    %128 = math.tanh %127 : vector<2x16xf32>
    %129 = arith.mulf %125, %113 : vector<2x16xf32>
    %130 = arith.mulf %124, %128 : vector<2x16xf32>
    %131 = arith.addf %129, %130 : vector<2x16xf32>
    %132 = math.tanh %131 : vector<2x16xf32>
    %133 = arith.mulf %126, %132 : vector<2x16xf32>
    %134 = vector.extract_strided_slice %59 {offsets = [8, 0], sizes = [2, 64], strides = [1, 1]} : vector<16x64xf32> to vector<2x64xf32>
    %cst_35 = arith.constant dense<0.000000e+00> : vector<2x64xf32>
    %135 = tpu.matmul %133, %1, %cst_35 {dimension_numbers = #tpu.dot_dimension_numbers<[1], [0], [0], [1], [0, 0, 1, 1], [], []>} : vector<2x16xf32>, vector<16x64xf32>, vector<2x64xf32> -> vector<2x64xf32>
    %136 = arith.addf %134, %135 : vector<2x64xf32>
    %137 = arith.negf %136 : vector<2x64xf32>
    %138 = math.exp %137 : vector<2x64xf32>
    %cst_36 = arith.constant 1.000000e+00 : f32
    %139 = vector.broadcast %cst_36 : f32 to vector<2x64xf32>
    %140 = arith.addf %139, %138 : vector<2x64xf32>
    %141 = arith.divf %139, %140 : vector<2x64xf32>
    %142 = vector.extract_strided_slice %141 {offsets = [0, 0], sizes = [2, 16], strides = [1, 1]} : vector<2x64xf32> to vector<2x16xf32>
    %143 = vector.extract_strided_slice %141 {offsets = [0, 16], sizes = [2, 16], strides = [1, 1]} : vector<2x64xf32> to vector<2x16xf32>
    %144 = vector.extract_strided_slice %141 {offsets = [0, 48], sizes = [2, 16], strides = [1, 1]} : vector<2x64xf32> to vector<2x16xf32>
    %145 = vector.extract_strided_slice %136 {offsets = [0, 32], sizes = [2, 16], strides = [1, 1]} : vector<2x64xf32> to vector<2x16xf32>
    %146 = math.tanh %145 : vector<2x16xf32>
    %147 = arith.mulf %143, %131 : vector<2x16xf32>
    %148 = arith.mulf %142, %146 : vector<2x16xf32>
    %149 = arith.addf %147, %148 : vector<2x16xf32>
    %150 = math.tanh %149 : vector<2x16xf32>
    %151 = arith.mulf %144, %150 : vector<2x16xf32>
    %152 = vector.extract_strided_slice %59 {offsets = [10, 0], sizes = [2, 64], strides = [1, 1]} : vector<16x64xf32> to vector<2x64xf32>
    %cst_37 = arith.constant dense<0.000000e+00> : vector<2x64xf32>
    %153 = tpu.matmul %151, %1, %cst_37 {dimension_numbers = #tpu.dot_dimension_numbers<[1], [0], [0], [1], [0, 0, 1, 1], [], []>} : vector<2x16xf32>, vector<16x64xf32>, vector<2x64xf32> -> vector<2x64xf32>
    %154 = arith.addf %152, %153 : vector<2x64xf32>
    %155 = arith.negf %154 : vector<2x64xf32>
    %156 = math.exp %155 : vector<2x64xf32>
    %cst_38 = arith.constant 1.000000e+00 : f32
    %157 = vector.broadcast %cst_38 : f32 to vector<2x64xf32>
    %158 = arith.addf %157, %156 : vector<2x64xf32>
    %159 = arith.divf %157, %158 : vector<2x64xf32>
    %160 = vector.extract_strided_slice %159 {offsets = [0, 0], sizes = [2, 16], strides = [1, 1]} : vector<2x64xf32> to vector<2x16xf32>
    %161 = vector.extract_strided_slice %159 {offsets = [0, 16], sizes = [2, 16], strides = [1, 1]} : vector<2x64xf32> to vector<2x16xf32>
    %162 = vector.extract_strided_slice %159 {offsets = [0, 48], sizes = [2, 16], strides = [1, 1]} : vector<2x64xf32> to vector<2x16xf32>
    %163 = vector.extract_strided_slice %154 {offsets = [0, 32], sizes = [2, 16], strides = [1, 1]} : vector<2x64xf32> to vector<2x16xf32>
    %164 = math.tanh %163 : vector<2x16xf32>
    %165 = arith.mulf %161, %149 : vector<2x16xf32>
    %166 = arith.mulf %160, %164 : vector<2x16xf32>
    %167 = arith.addf %165, %166 : vector<2x16xf32>
    %168 = math.tanh %167 : vector<2x16xf32>
    %169 = arith.mulf %162, %168 : vector<2x16xf32>
    %170 = vector.extract_strided_slice %59 {offsets = [12, 0], sizes = [2, 64], strides = [1, 1]} : vector<16x64xf32> to vector<2x64xf32>
    %cst_39 = arith.constant dense<0.000000e+00> : vector<2x64xf32>
    %171 = tpu.matmul %169, %1, %cst_39 {dimension_numbers = #tpu.dot_dimension_numbers<[1], [0], [0], [1], [0, 0, 1, 1], [], []>} : vector<2x16xf32>, vector<16x64xf32>, vector<2x64xf32> -> vector<2x64xf32>
    %172 = arith.addf %170, %171 : vector<2x64xf32>
    %173 = arith.negf %172 : vector<2x64xf32>
    %174 = math.exp %173 : vector<2x64xf32>
    %cst_40 = arith.constant 1.000000e+00 : f32
    %175 = vector.broadcast %cst_40 : f32 to vector<2x64xf32>
    %176 = arith.addf %175, %174 : vector<2x64xf32>
    %177 = arith.divf %175, %176 : vector<2x64xf32>
    %178 = vector.extract_strided_slice %177 {offsets = [0, 0], sizes = [2, 16], strides = [1, 1]} : vector<2x64xf32> to vector<2x16xf32>
    %179 = vector.extract_strided_slice %177 {offsets = [0, 16], sizes = [2, 16], strides = [1, 1]} : vector<2x64xf32> to vector<2x16xf32>
    %180 = vector.extract_strided_slice %177 {offsets = [0, 48], sizes = [2, 16], strides = [1, 1]} : vector<2x64xf32> to vector<2x16xf32>
    %181 = vector.extract_strided_slice %172 {offsets = [0, 32], sizes = [2, 16], strides = [1, 1]} : vector<2x64xf32> to vector<2x16xf32>
    %182 = math.tanh %181 : vector<2x16xf32>
    %183 = arith.mulf %179, %167 : vector<2x16xf32>
    %184 = arith.mulf %178, %182 : vector<2x16xf32>
    %185 = arith.addf %183, %184 : vector<2x16xf32>
    %186 = math.tanh %185 : vector<2x16xf32>
    %187 = arith.mulf %180, %186 : vector<2x16xf32>
    %188 = vector.extract_strided_slice %59 {offsets = [14, 0], sizes = [2, 64], strides = [1, 1]} : vector<16x64xf32> to vector<2x64xf32>
    %cst_41 = arith.constant dense<0.000000e+00> : vector<2x64xf32>
    %189 = tpu.matmul %187, %1, %cst_41 {dimension_numbers = #tpu.dot_dimension_numbers<[1], [0], [0], [1], [0, 0, 1, 1], [], []>} : vector<2x16xf32>, vector<16x64xf32>, vector<2x64xf32> -> vector<2x64xf32>
    %190 = arith.addf %188, %189 : vector<2x64xf32>
    %191 = arith.negf %190 : vector<2x64xf32>
    %192 = math.exp %191 : vector<2x64xf32>
    %cst_42 = arith.constant 1.000000e+00 : f32
    %193 = vector.broadcast %cst_42 : f32 to vector<2x64xf32>
    %194 = arith.addf %193, %192 : vector<2x64xf32>
    %195 = arith.divf %193, %194 : vector<2x64xf32>
    %196 = vector.extract_strided_slice %195 {offsets = [0, 0], sizes = [2, 16], strides = [1, 1]} : vector<2x64xf32> to vector<2x16xf32>
    %197 = vector.extract_strided_slice %195 {offsets = [0, 16], sizes = [2, 16], strides = [1, 1]} : vector<2x64xf32> to vector<2x16xf32>
    %198 = vector.extract_strided_slice %195 {offsets = [0, 48], sizes = [2, 16], strides = [1, 1]} : vector<2x64xf32> to vector<2x16xf32>
    %199 = vector.extract_strided_slice %190 {offsets = [0, 32], sizes = [2, 16], strides = [1, 1]} : vector<2x64xf32> to vector<2x16xf32>
    %200 = math.tanh %199 : vector<2x16xf32>
    %201 = arith.mulf %197, %185 : vector<2x16xf32>
    %202 = arith.mulf %196, %200 : vector<2x16xf32>
    %203 = arith.addf %201, %202 : vector<2x16xf32>
    %204 = math.tanh %203 : vector<2x16xf32>
    %205 = arith.mulf %198, %204 : vector<2x16xf32>
    %206 = tpu.concatenate %79, %97, %115, %133, %151, %169, %187, %205 in 0 : vector<2x16xf32>, vector<2x16xf32>, vector<2x16xf32>, vector<2x16xf32>, vector<2x16xf32>, vector<2x16xf32>, vector<2x16xf32>, vector<2x16xf32> -> vector<16x16xf32>
    %cst_43 = arith.constant dense<0.000000e+00> : vector<16x64xf32>
    %207 = tpu.matmul %206, %2, %cst_43 {dimension_numbers = #tpu.dot_dimension_numbers<[1], [0], [0], [1], [0, 0, 1, 1], [], []>} : vector<16x16xf32>, vector<16x64xf32>, vector<16x64xf32> -> vector<16x64xf32>
    %208 = vector.broadcast %6 : vector<1x64xf32> to vector<16x64xf32>
    %209 = arith.addf %207, %208 : vector<16x64xf32>
    %cst_44 = arith.constant 0.000000e+00 : f32
    %210 = vector.broadcast %cst_44 : f32 to vector<2x16xf32>
    %cst_45 = arith.constant 0.000000e+00 : f32
    %211 = vector.broadcast %cst_45 : f32 to vector<2x16xf32>
    %212 = vector.extract_strided_slice %209 {offsets = [0, 0], sizes = [2, 64], strides = [1, 1]} : vector<16x64xf32> to vector<2x64xf32>
    %cst_46 = arith.constant dense<0.000000e+00> : vector<2x64xf32>
    %213 = tpu.matmul %210, %3, %cst_46 {dimension_numbers = #tpu.dot_dimension_numbers<[1], [0], [0], [1], [0, 0, 1, 1], [], []>} : vector<2x16xf32>, vector<16x64xf32>, vector<2x64xf32> -> vector<2x64xf32>
    %214 = arith.addf %212, %213 : vector<2x64xf32>
    %215 = arith.negf %214 : vector<2x64xf32>
    %216 = math.exp %215 : vector<2x64xf32>
    %cst_47 = arith.constant 1.000000e+00 : f32
    %217 = vector.broadcast %cst_47 : f32 to vector<2x64xf32>
    %218 = arith.addf %217, %216 : vector<2x64xf32>
    %219 = arith.divf %217, %218 : vector<2x64xf32>
    %220 = vector.extract_strided_slice %219 {offsets = [0, 0], sizes = [2, 16], strides = [1, 1]} : vector<2x64xf32> to vector<2x16xf32>
    %221 = vector.extract_strided_slice %219 {offsets = [0, 16], sizes = [2, 16], strides = [1, 1]} : vector<2x64xf32> to vector<2x16xf32>
    %222 = vector.extract_strided_slice %219 {offsets = [0, 48], sizes = [2, 16], strides = [1, 1]} : vector<2x64xf32> to vector<2x16xf32>
    %223 = vector.extract_strided_slice %214 {offsets = [0, 32], sizes = [2, 16], strides = [1, 1]} : vector<2x64xf32> to vector<2x16xf32>
    %224 = math.tanh %223 : vector<2x16xf32>
    %225 = arith.mulf %221, %211 : vector<2x16xf32>
    %226 = arith.mulf %220, %224 : vector<2x16xf32>
    %227 = arith.addf %225, %226 : vector<2x16xf32>
    %228 = math.tanh %227 : vector<2x16xf32>
    %229 = arith.mulf %222, %228 : vector<2x16xf32>
    %230 = vector.extract_strided_slice %209 {offsets = [2, 0], sizes = [2, 64], strides = [1, 1]} : vector<16x64xf32> to vector<2x64xf32>
    %cst_48 = arith.constant dense<0.000000e+00> : vector<2x64xf32>
    %231 = tpu.matmul %229, %3, %cst_48 {dimension_numbers = #tpu.dot_dimension_numbers<[1], [0], [0], [1], [0, 0, 1, 1], [], []>} : vector<2x16xf32>, vector<16x64xf32>, vector<2x64xf32> -> vector<2x64xf32>
    %232 = arith.addf %230, %231 : vector<2x64xf32>
    %233 = arith.negf %232 : vector<2x64xf32>
    %234 = math.exp %233 : vector<2x64xf32>
    %cst_49 = arith.constant 1.000000e+00 : f32
    %235 = vector.broadcast %cst_49 : f32 to vector<2x64xf32>
    %236 = arith.addf %235, %234 : vector<2x64xf32>
    %237 = arith.divf %235, %236 : vector<2x64xf32>
    %238 = vector.extract_strided_slice %237 {offsets = [0, 0], sizes = [2, 16], strides = [1, 1]} : vector<2x64xf32> to vector<2x16xf32>
    %239 = vector.extract_strided_slice %237 {offsets = [0, 16], sizes = [2, 16], strides = [1, 1]} : vector<2x64xf32> to vector<2x16xf32>
    %240 = vector.extract_strided_slice %237 {offsets = [0, 48], sizes = [2, 16], strides = [1, 1]} : vector<2x64xf32> to vector<2x16xf32>
    %241 = vector.extract_strided_slice %232 {offsets = [0, 32], sizes = [2, 16], strides = [1, 1]} : vector<2x64xf32> to vector<2x16xf32>
    %242 = math.tanh %241 : vector<2x16xf32>
    %243 = arith.mulf %239, %227 : vector<2x16xf32>
    %244 = arith.mulf %238, %242 : vector<2x16xf32>
    %245 = arith.addf %243, %244 : vector<2x16xf32>
    %246 = math.tanh %245 : vector<2x16xf32>
    %247 = arith.mulf %240, %246 : vector<2x16xf32>
    %248 = vector.extract_strided_slice %209 {offsets = [4, 0], sizes = [2, 64], strides = [1, 1]} : vector<16x64xf32> to vector<2x64xf32>
    %cst_50 = arith.constant dense<0.000000e+00> : vector<2x64xf32>
    %249 = tpu.matmul %247, %3, %cst_50 {dimension_numbers = #tpu.dot_dimension_numbers<[1], [0], [0], [1], [0, 0, 1, 1], [], []>} : vector<2x16xf32>, vector<16x64xf32>, vector<2x64xf32> -> vector<2x64xf32>
    %250 = arith.addf %248, %249 : vector<2x64xf32>
    %251 = arith.negf %250 : vector<2x64xf32>
    %252 = math.exp %251 : vector<2x64xf32>
    %cst_51 = arith.constant 1.000000e+00 : f32
    %253 = vector.broadcast %cst_51 : f32 to vector<2x64xf32>
    %254 = arith.addf %253, %252 : vector<2x64xf32>
    %255 = arith.divf %253, %254 : vector<2x64xf32>
    %256 = vector.extract_strided_slice %255 {offsets = [0, 0], sizes = [2, 16], strides = [1, 1]} : vector<2x64xf32> to vector<2x16xf32>
    %257 = vector.extract_strided_slice %255 {offsets = [0, 16], sizes = [2, 16], strides = [1, 1]} : vector<2x64xf32> to vector<2x16xf32>
    %258 = vector.extract_strided_slice %255 {offsets = [0, 48], sizes = [2, 16], strides = [1, 1]} : vector<2x64xf32> to vector<2x16xf32>
    %259 = vector.extract_strided_slice %250 {offsets = [0, 32], sizes = [2, 16], strides = [1, 1]} : vector<2x64xf32> to vector<2x16xf32>
    %260 = math.tanh %259 : vector<2x16xf32>
    %261 = arith.mulf %257, %245 : vector<2x16xf32>
    %262 = arith.mulf %256, %260 : vector<2x16xf32>
    %263 = arith.addf %261, %262 : vector<2x16xf32>
    %264 = math.tanh %263 : vector<2x16xf32>
    %265 = arith.mulf %258, %264 : vector<2x16xf32>
    %266 = vector.extract_strided_slice %209 {offsets = [6, 0], sizes = [2, 64], strides = [1, 1]} : vector<16x64xf32> to vector<2x64xf32>
    %cst_52 = arith.constant dense<0.000000e+00> : vector<2x64xf32>
    %267 = tpu.matmul %265, %3, %cst_52 {dimension_numbers = #tpu.dot_dimension_numbers<[1], [0], [0], [1], [0, 0, 1, 1], [], []>} : vector<2x16xf32>, vector<16x64xf32>, vector<2x64xf32> -> vector<2x64xf32>
    %268 = arith.addf %266, %267 : vector<2x64xf32>
    %269 = arith.negf %268 : vector<2x64xf32>
    %270 = math.exp %269 : vector<2x64xf32>
    %cst_53 = arith.constant 1.000000e+00 : f32
    %271 = vector.broadcast %cst_53 : f32 to vector<2x64xf32>
    %272 = arith.addf %271, %270 : vector<2x64xf32>
    %273 = arith.divf %271, %272 : vector<2x64xf32>
    %274 = vector.extract_strided_slice %273 {offsets = [0, 0], sizes = [2, 16], strides = [1, 1]} : vector<2x64xf32> to vector<2x16xf32>
    %275 = vector.extract_strided_slice %273 {offsets = [0, 16], sizes = [2, 16], strides = [1, 1]} : vector<2x64xf32> to vector<2x16xf32>
    %276 = vector.extract_strided_slice %273 {offsets = [0, 48], sizes = [2, 16], strides = [1, 1]} : vector<2x64xf32> to vector<2x16xf32>
    %277 = vector.extract_strided_slice %268 {offsets = [0, 32], sizes = [2, 16], strides = [1, 1]} : vector<2x64xf32> to vector<2x16xf32>
    %278 = math.tanh %277 : vector<2x16xf32>
    %279 = arith.mulf %275, %263 : vector<2x16xf32>
    %280 = arith.mulf %274, %278 : vector<2x16xf32>
    %281 = arith.addf %279, %280 : vector<2x16xf32>
    %282 = math.tanh %281 : vector<2x16xf32>
    %283 = arith.mulf %276, %282 : vector<2x16xf32>
    %284 = vector.extract_strided_slice %209 {offsets = [8, 0], sizes = [2, 64], strides = [1, 1]} : vector<16x64xf32> to vector<2x64xf32>
    %cst_54 = arith.constant dense<0.000000e+00> : vector<2x64xf32>
    %285 = tpu.matmul %283, %3, %cst_54 {dimension_numbers = #tpu.dot_dimension_numbers<[1], [0], [0], [1], [0, 0, 1, 1], [], []>} : vector<2x16xf32>, vector<16x64xf32>, vector<2x64xf32> -> vector<2x64xf32>
    %286 = arith.addf %284, %285 : vector<2x64xf32>
    %287 = arith.negf %286 : vector<2x64xf32>
    %288 = math.exp %287 : vector<2x64xf32>
    %cst_55 = arith.constant 1.000000e+00 : f32
    %289 = vector.broadcast %cst_55 : f32 to vector<2x64xf32>
    %290 = arith.addf %289, %288 : vector<2x64xf32>
    %291 = arith.divf %289, %290 : vector<2x64xf32>
    %292 = vector.extract_strided_slice %291 {offsets = [0, 0], sizes = [2, 16], strides = [1, 1]} : vector<2x64xf32> to vector<2x16xf32>
    %293 = vector.extract_strided_slice %291 {offsets = [0, 16], sizes = [2, 16], strides = [1, 1]} : vector<2x64xf32> to vector<2x16xf32>
    %294 = vector.extract_strided_slice %291 {offsets = [0, 48], sizes = [2, 16], strides = [1, 1]} : vector<2x64xf32> to vector<2x16xf32>
    %295 = vector.extract_strided_slice %286 {offsets = [0, 32], sizes = [2, 16], strides = [1, 1]} : vector<2x64xf32> to vector<2x16xf32>
    %296 = math.tanh %295 : vector<2x16xf32>
    %297 = arith.mulf %293, %281 : vector<2x16xf32>
    %298 = arith.mulf %292, %296 : vector<2x16xf32>
    %299 = arith.addf %297, %298 : vector<2x16xf32>
    %300 = math.tanh %299 : vector<2x16xf32>
    %301 = arith.mulf %294, %300 : vector<2x16xf32>
    %302 = vector.extract_strided_slice %209 {offsets = [10, 0], sizes = [2, 64], strides = [1, 1]} : vector<16x64xf32> to vector<2x64xf32>
    %cst_56 = arith.constant dense<0.000000e+00> : vector<2x64xf32>
    %303 = tpu.matmul %301, %3, %cst_56 {dimension_numbers = #tpu.dot_dimension_numbers<[1], [0], [0], [1], [0, 0, 1, 1], [], []>} : vector<2x16xf32>, vector<16x64xf32>, vector<2x64xf32> -> vector<2x64xf32>
    %304 = arith.addf %302, %303 : vector<2x64xf32>
    %305 = arith.negf %304 : vector<2x64xf32>
    %306 = math.exp %305 : vector<2x64xf32>
    %cst_57 = arith.constant 1.000000e+00 : f32
    %307 = vector.broadcast %cst_57 : f32 to vector<2x64xf32>
    %308 = arith.addf %307, %306 : vector<2x64xf32>
    %309 = arith.divf %307, %308 : vector<2x64xf32>
    %310 = vector.extract_strided_slice %309 {offsets = [0, 0], sizes = [2, 16], strides = [1, 1]} : vector<2x64xf32> to vector<2x16xf32>
    %311 = vector.extract_strided_slice %309 {offsets = [0, 16], sizes = [2, 16], strides = [1, 1]} : vector<2x64xf32> to vector<2x16xf32>
    %312 = vector.extract_strided_slice %309 {offsets = [0, 48], sizes = [2, 16], strides = [1, 1]} : vector<2x64xf32> to vector<2x16xf32>
    %313 = vector.extract_strided_slice %304 {offsets = [0, 32], sizes = [2, 16], strides = [1, 1]} : vector<2x64xf32> to vector<2x16xf32>
    %314 = math.tanh %313 : vector<2x16xf32>
    %315 = arith.mulf %311, %299 : vector<2x16xf32>
    %316 = arith.mulf %310, %314 : vector<2x16xf32>
    %317 = arith.addf %315, %316 : vector<2x16xf32>
    %318 = math.tanh %317 : vector<2x16xf32>
    %319 = arith.mulf %312, %318 : vector<2x16xf32>
    %320 = vector.extract_strided_slice %209 {offsets = [12, 0], sizes = [2, 64], strides = [1, 1]} : vector<16x64xf32> to vector<2x64xf32>
    %cst_58 = arith.constant dense<0.000000e+00> : vector<2x64xf32>
    %321 = tpu.matmul %319, %3, %cst_58 {dimension_numbers = #tpu.dot_dimension_numbers<[1], [0], [0], [1], [0, 0, 1, 1], [], []>} : vector<2x16xf32>, vector<16x64xf32>, vector<2x64xf32> -> vector<2x64xf32>
    %322 = arith.addf %320, %321 : vector<2x64xf32>
    %323 = arith.negf %322 : vector<2x64xf32>
    %324 = math.exp %323 : vector<2x64xf32>
    %cst_59 = arith.constant 1.000000e+00 : f32
    %325 = vector.broadcast %cst_59 : f32 to vector<2x64xf32>
    %326 = arith.addf %325, %324 : vector<2x64xf32>
    %327 = arith.divf %325, %326 : vector<2x64xf32>
    %328 = vector.extract_strided_slice %327 {offsets = [0, 0], sizes = [2, 16], strides = [1, 1]} : vector<2x64xf32> to vector<2x16xf32>
    %329 = vector.extract_strided_slice %327 {offsets = [0, 16], sizes = [2, 16], strides = [1, 1]} : vector<2x64xf32> to vector<2x16xf32>
    %330 = vector.extract_strided_slice %327 {offsets = [0, 48], sizes = [2, 16], strides = [1, 1]} : vector<2x64xf32> to vector<2x16xf32>
    %331 = vector.extract_strided_slice %322 {offsets = [0, 32], sizes = [2, 16], strides = [1, 1]} : vector<2x64xf32> to vector<2x16xf32>
    %332 = math.tanh %331 : vector<2x16xf32>
    %333 = arith.mulf %329, %317 : vector<2x16xf32>
    %334 = arith.mulf %328, %332 : vector<2x16xf32>
    %335 = arith.addf %333, %334 : vector<2x16xf32>
    %336 = math.tanh %335 : vector<2x16xf32>
    %337 = arith.mulf %330, %336 : vector<2x16xf32>
    %338 = vector.extract_strided_slice %209 {offsets = [14, 0], sizes = [2, 64], strides = [1, 1]} : vector<16x64xf32> to vector<2x64xf32>
    %cst_60 = arith.constant dense<0.000000e+00> : vector<2x64xf32>
    %339 = tpu.matmul %337, %3, %cst_60 {dimension_numbers = #tpu.dot_dimension_numbers<[1], [0], [0], [1], [0, 0, 1, 1], [], []>} : vector<2x16xf32>, vector<16x64xf32>, vector<2x64xf32> -> vector<2x64xf32>
    %340 = arith.addf %338, %339 : vector<2x64xf32>
    %341 = arith.negf %340 : vector<2x64xf32>
    %342 = math.exp %341 : vector<2x64xf32>
    %cst_61 = arith.constant 1.000000e+00 : f32
    %343 = vector.broadcast %cst_61 : f32 to vector<2x64xf32>
    %344 = arith.addf %343, %342 : vector<2x64xf32>
    %345 = arith.divf %343, %344 : vector<2x64xf32>
    %346 = vector.extract_strided_slice %345 {offsets = [0, 0], sizes = [2, 16], strides = [1, 1]} : vector<2x64xf32> to vector<2x16xf32>
    %347 = vector.extract_strided_slice %345 {offsets = [0, 16], sizes = [2, 16], strides = [1, 1]} : vector<2x64xf32> to vector<2x16xf32>
    %348 = vector.extract_strided_slice %345 {offsets = [0, 48], sizes = [2, 16], strides = [1, 1]} : vector<2x64xf32> to vector<2x16xf32>
    %349 = vector.extract_strided_slice %340 {offsets = [0, 32], sizes = [2, 16], strides = [1, 1]} : vector<2x64xf32> to vector<2x16xf32>
    %350 = math.tanh %349 : vector<2x16xf32>
    %351 = arith.mulf %347, %335 : vector<2x16xf32>
    %352 = arith.mulf %346, %350 : vector<2x16xf32>
    %353 = arith.addf %351, %352 : vector<2x16xf32>
    %354 = math.tanh %353 : vector<2x16xf32>
    %355 = arith.mulf %348, %354 : vector<2x16xf32>
    %cst_62 = arith.constant dense<0.000000e+00> : vector<2x88xf32>
    %356 = tpu.matmul %355, %4, %cst_62 {dimension_numbers = #tpu.dot_dimension_numbers<[1], [0], [0], [1], [0, 0, 1, 1], [], []>} : vector<2x16xf32>, vector<16x88xf32>, vector<2x88xf32> -> vector<2x88xf32>
    %357 = vector.broadcast %7 : vector<1x88xf32> to vector<2x88xf32>
    %358 = arith.addf %356, %357 : vector<2x88xf32>
    %c0_63 = arith.constant 0 : index
    %c0_64 = arith.constant 0 : index
    %359 = vector.load %arg3[%c0_63, %c0_64] : memref<2x88xf32, #tpu.memory_space<vmem>>, vector<2x88xf32>
    tpu.vector_store %arg3[%c0_63, %c0_64], %358 {strides = array<i32>} : memref<2x88xf32, #tpu.memory_space<vmem>>, vector<2x88xf32>,
    return
  }
}

</mosaic_0001>

<llo_original>
// kernel: lstm_forward.1
$region0: #{lstm_forward.1}
  #allocation0 [shape = 'u32[]', space=smem, size = 0x4, offset = 0x4, fixed_abs, tag = 'smem constant byte address 0x4 - core index']
  #allocation1 [shape = 'u32[144,128]{1,0:T(1,128)}', space=vmem, size = 0x12000, scoped, tag = 'internal scratch']
  %s0 = inlined_call_operand.vmem [shape: s32[16], index: 0, kind: input, shape index: {}]
  %s1 = inlined_call_operand.hbm [shape: f32[176,88], index: 1, kind: input, shape index: {}]
  %s2 = inlined_call_operand.hbm [shape: f32[160,128], index: 2, kind: input, shape index: {}]
  %s3 = inlined_call_operand.hbm [shape: f32[2,88], index: 3, kind: output, shape index: {}]
  %s4 = sld [smem:[#allocation0]]
  $region34: #{lstm_forward.1} parent=0
    _
  %s6 = ssub.s32 1, %s4
  %s7 = scalar_select 0, %s6, %s4
  $region1: #{lstm_forward.1} parent=0
    #allocation2 [shape = 'u8[512]{0}', space=smem, size = 0x200, scoped, tag = 'input window, operand 0, single buffered']
    #allocation3 [shape = 's32[1]{0}', space=sflag, size = 0x4, scoped, tag = 'scoped memory for lstm_forward.1']
    #allocation4 [shape = 's32[1]{0}', space=sflag, size = 0x4, scoped, tag = 'scoped memory for lstm_forward.1']
    #allocation5 [shape = 's32[1]{0}', space=sflag, size = 0x4, scoped, tag = 'scoped memory for lstm_forward.1']
    #allocation6 [shape = 'u8[90112]{0}', space=vmem, size = 0x16000, scoped, tag = 'input window, operand 1, single buffered']
    #allocation7 [shape = 'u8[81920]{0}', space=vmem, size = 0x14000, scoped, tag = 'input window, operand 2, single buffered']
    #allocation8 [shape = 's32[1]{0}', space=sflag, size = 0x4, scoped, tag = 'scoped memory for lstm_forward.1']
    #allocation9 [shape = 'u8[1024]{0}', space=vmem, size = 0x400, scoped, tag = 'output window, operand 0, single buffered']
    %8 = vsyncpa [#allocation5], 0
    %9 = vsyncpa [#allocation3], 0
    %10 = vsyncpa [#allocation8], 0
    %11 = vsyncpa [#allocation4], 0
    // Predicated region
    $region2: #{lstm_forward.1} parent=1 // pred_check
      _
    $region3: #{lstm_forward.1} parent=1 // pred_check_branch
      %13 = sbr.rel (0) target = $region5
    $region4: #{lstm_forward.1} parent=1 // pred_region
      %s15 = ssub.s32 16, 16
      %16 = vsyncadd [#allocation5], %s15
      %s18 = sshll.u32 %s0, 4
      %s19 = int_to_ptr.vmem [resolvable:$true] %s18
      %21 = dma.vmem_to_smem %s19, 16, [#allocation2], [#allocation5]
    $region5: #{lstm_forward.1} parent=1 // pred_fallthru
      _
    // Predicated region
    $region6: #{lstm_forward.1} parent=1 // pred_check
      _
    $region7: #{lstm_forward.1} parent=1 // pred_check_branch
      %23 = sbr.rel (0) target = $region9
    $region8: #{lstm_forward.1} parent=1 // pred_region
      %s25 = ssub.s32 2816, 2816
      %26 = vsyncadd [#allocation3], %s25
      %s27 = sshll.u32 [#allocation6], 4
      %s28 = int_to_ptr.vmem [resolvable:$true] %s27
      %33 = dma.hbm_to_vmem [thread:$0]  %s1, 2816, %s28, [#allocation3], 128, 128, 8
    $region9: #{lstm_forward.1} parent=1 // pred_fallthru
      _
    // Predicated region
    $region10: #{lstm_forward.1} parent=1 // pred_check
      _
    $region11: #{lstm_forward.1} parent=1 // pred_check_branch
      %35 = sbr.rel (0) target = $region13
    $region12: #{lstm_forward.1} parent=1 // pred_region
      %s37 = ssub.s32 2560, 2560
      %38 = vsyncadd [#allocation8], %s37
      %s39 = sshll.u32 [#allocation7], 4
      %s40 = int_to_ptr.vmem [resolvable:$true] %s39
      %45 = dma.hbm_to_vmem [thread:$0]  %s2, 2560, %s40, [#allocation8], 128, 128, 8
    $region13: #{lstm_forward.1} parent=1 // pred_fallthru
      _
    // Predicated region
    $region14: #{lstm_forward.1} parent=1 // pred_check
      _
    $region15: #{lstm_forward.1} parent=1 // pred_check_branch
      %47 = sbr.rel (0) target = $region17
    $region16: #{lstm_forward.1} parent=1 // pred_region
      %48 = dma.done [#allocation5], 16
    $region17: #{lstm_forward.1} parent=1 // pred_fallthru
      _
    // Predicated region
    $region18: #{lstm_forward.1} parent=1 // pred_check
      _
    $region19: #{lstm_forward.1} parent=1 // pred_check_branch
      %50 = sbr.rel (0) target = $region21
    $region20: #{lstm_forward.1} parent=1 // pred_region
      %51 = dma.done [#allocation3], 2816
    $region21: #{lstm_forward.1} parent=1 // pred_fallthru
      _
    // Predicated region
    $region22: #{lstm_forward.1} parent=1 // pred_check
      _
    $region23: #{lstm_forward.1} parent=1 // pred_check_branch
      %53 = sbr.rel (0) target = $region25
    $region24: #{lstm_forward.1} parent=1 // pred_region
      %54 = dma.done [#allocation8], 2560
    $region25: #{lstm_forward.1} parent=1 // pred_fallthru
      _
    %55 = sfence
    %v56 = vld [vmem:[#allocation7] sm:$0xff]
    %v57 = vld [vmem:[#allocation7 + $0x8] sm:$0xff]
    %v58 = vld [vmem:[#allocation7 + $0x10] sm:$0xff]
    %v59 = vld [vmem:[#allocation7 + $0x18] sm:$0xff]
    %v60 = vld [vmem:[#allocation7 + $0x20] sm:$0xff]
    %v61 = vld [vmem:[#allocation7 + $0x28] sm:$0xff]
    %v62 = vld [vmem:[#allocation7 + $0x30] sm:$0xff]
    %v63 = vld [vmem:[#allocation7 + $0x38] sm:$0xff]
    %v64 = vld [vmem:[#allocation7 + $0x40] sm:$0xff]
    %v65 = vld [vmem:[#allocation7 + $0x48] sm:$0xff]
    %v66 = vld [vmem:[#allocation7 + $0x50] sm:$0xff]
    %v67 = vld [vmem:[#allocation7 + $0x58] sm:$0xff]
    %v68 = vld [vmem:[#allocation7 + $0x60] sm:$0xff]
    %v69 = vld [vmem:[#allocation7 + $0x68] sm:$0xff]
    %v70 = vld [vmem:[#allocation7 + $0x70] sm:$0xff]
    %v71 = vld [vmem:[#allocation7 + $0x78] sm:$0xff]
    %v72 = vld [vmem:[#allocation7 + $0x80] sm:$0xff]
    %v73 = vld [vmem:[#allocation7 + $0x88] sm:$0xff]
    %v74 = vld [vmem:[#allocation7 + $0x90] sm:$0xff]
    %v75 = vld [vmem:[#allocation7 + $0x98] sm:$0x1]
    %v76 = vld [vmem:[#allocation7 + $0x99] sm:$0x1]
    %v77 = vld [vmem:[#allocation7 + $0x9a] sm:$0x1]
    %s78 = sld [smem:[#allocation2]]
    %s79 = scalar_lea.vmem [#allocation6], %s78
    %v80 = vld [vmem:[%s79] sm:$0x1]
    %s81 = sld [smem:[#allocation2 + $0x8]]
    %s82 = scalar_lea.vmem [#allocation6], %s81
    %v83 = vld [vmem:[%s82] sm:$0x1]
    %s84 = sld [smem:[#allocation2 + $0x1]]
    %s85 = scalar_lea.vmem [#allocation6], %s84
    %v86 = vld [vmem:[%s85] sm:$0x1]
    %s87 = sld [smem:[#allocation2 + $0x9]]
    %s88 = scalar_lea.vmem [#allocation6], %s87
    %v89 = vld [vmem:[%s88] sm:$0x1]
    %s90 = sld [smem:[#allocation2 + $0x2]]
    %s91 = scalar_lea.vmem [#allocation6], %s90
    %v92 = vld [vmem:[%s91] sm:$0x1]
    %s93 = sld [smem:[#allocation2 + $0xa]]
    %s94 = scalar_lea.vmem [#allocation6], %s93
    %v95 = vld [vmem:[%s94] sm:$0x1]
    %s96 = sld [smem:[#allocation2 + $0x3]]
    %s97 = scalar_lea.vmem [#allocation6], %s96
    %v98 = vld [vmem:[%s97] sm:$0x1]
    %s99 = sld [smem:[#allocation2 + $0xb]]
    %s100 = scalar_lea.vmem [#allocation6], %s99
    %v101 = vld [vmem:[%s100] sm:$0x1]
    %s102 = sld [smem:[#allocation2 + $0x4]]
    %s103 = scalar_lea.vmem [#allocation6], %s102
    %v104 = vld [vmem:[%s103] sm:$0x1]
    %s105 = sld [smem:[#allocation2 + $0xc]]
    %s106 = scalar_lea.vmem [#allocation6], %s105
    %v107 = vld [vmem:[%s106] sm:$0x1]
    %s108 = sld [smem:[#allocation2 + $0x5]]
    %s109 = scalar_lea.vmem [#allocation6], %s108
    %v110 = vld [vmem:[%s109] sm:$0x1]
    %s111 = sld [smem:[#allocation2 + $0xd]]
    %s112 = scalar_lea.vmem [#allocation6], %s111
    %v113 = vld [vmem:[%s112] sm:$0x1]
    %s114 = sld [smem:[#allocation2 + $0x6]]
    %s115 = scalar_lea.vmem [#allocation6], %s114
    %v116 = vld [vmem:[%s115] sm:$0x1]
    %s117 = sld [smem:[#allocation2 + $0xe]]
    %s118 = scalar_lea.vmem [#allocation6], %s117
    %v119 = vld [vmem:[%s118] sm:$0x1]
    %s120 = sld [smem:[#allocation2 + $0x7]]
    %s121 = scalar_lea.vmem [#allocation6], %s120
    %v122 = vld [vmem:[%s121] sm:$0x1]
    %s123 = sld [smem:[#allocation2 + $0xf]]
    %s124 = scalar_lea.vmem [#allocation6], %s123
    %v125 = vld [vmem:[%s124] sm:$0x1]
    %v127 = vrot.slane %v83, 7
    %v130 = vrot.slane %v86, 6
    %v133 = vrot.slane %v89, 5
    %v136 = vrot.slane %v92, 4
    %v139 = vrot.slane %v95, 3
    %v142 = vrot.slane %v98, 2
    %v145 = vrot.slane %v101, 1
    %v148 = vrot.slane %v107, 7
    %v151 = vrot.slane %v110, 6
    %v154 = vrot.slane %v113, 5
    %v157 = vrot.slane %v116, 4
    %v160 = vrot.slane %v119, 3
    %v163 = vrot.slane %v122, 2
    %v166 = vrot.slane %v125, 1
    %vm168 = vcmask 1040384
    %v169 = vsel %vm168, %v80, %v127
    %vm170 = vcmask 1041408
    %v171 = vsel %vm170, %v169, %v130
    %vm172 = vcmask 1042432
    %v173 = vsel %vm172, %v171, %v133
    %vm174 = vcmask 1043456
    %v175 = vsel %vm174, %v173, %v136
    %vm176 = vcmask 1044480
    %v177 = vsel %vm176, %v175, %v139
    %vm178 = vcmask 1045504
    %v179 = vsel %vm178, %v177, %v142
    %vm180 = vcmask 1046528
    %v181 = vsel %vm180, %v179, %v145
    %v182 = vsel %vm168, %v104, %v148
    %v183 = vsel %vm170, %v182, %v151
    %v184 = vsel %vm172, %v183, %v154
    %v185 = vsel %vm174, %v184, %v157
    %v186 = vsel %vm176, %v185, %v160
    %v187 = vsel %vm178, %v186, %v163
    %v188 = vsel %vm180, %v187, %v166
    %v189 = vlaneseq
    %v190 = vshrl.u32 %v189, 7
    %v191 = vsub.s32 0, %v190
    %v192 = vrot.slane %v75, %v191
    %vm193 = vcmask 719872
    %v195 = vsel %vm193, %v181, 0
    %v198 = vsel %vm193, %v188, 0
    %200 = vmatprep.subr.mxu0 0.0
    %201 = vmatpush1.msra.mxu0 0.0
    %202 = vmatprep.subr.mxu0 0.0
    %203 = vmatpush1.msra.mxu0 0.0
    %204 = vmatprep.subr.mxu0 0.0
    %205 = vmatpush1.msra.mxu0 0.0
    %206 = vmatprep.subr.mxu0 0.0
    %207 = vmatpush1.msra.mxu0 0.0
    %208 = vmatprep.subr.mxu0 0.0
    %209 = vmatpush1.msra.mxu0 0.0
    %210 = vmatprep.subr.mxu0 0.0
    %211 = vmatpush1.msra.mxu0 %v66
    %212 = vmatprep.subr.mxu0 0.0
    %213 = vmatpush1.msra.mxu0 %v65
    %214 = vmatprep.subr.mxu0 0.0
    %215 = vmatpush1.msra.mxu0 %v64
    %216 = vmatprep.subr.mxu0 0.0
    %217 = vmatpush1.msra.mxu0 %v63
    %218 = vmatprep.subr.mxu0 0.0
    %219 = vmatpush1.msra.mxu0 %v62
    %220 = vmatprep.subr.mxu0 0.0
    %221 = vmatpush1.msra.mxu0 %v61
    %222 = vmatprep.subr.mxu0 0.0
    %223 = vmatpush1.msra.mxu0 %v60
    %224 = vmatprep.subr.mxu0 0.0
    %225 = vmatpush1.msra.mxu0 %v59
    %226 = vmatprep.subr.mxu0 0.0
    %227 = vmatpush1.msra.mxu0 %v58
    %228 = vmatprep.subr.mxu0 0.0
    %229 = vmatpush1.msra.mxu0 %v57
    %230 = vmatprep.subr.mxu0 0.0
    %231 = vmatpush1.msra.mxu0 %v56
    %232 = vmatprep.subr.mxu0 0.0
    %233 = vmatpush2.msra.mxu0 0.0
    %234 = vmatprep.subr.mxu0 0.0
    %235 = vmatpush2.msra.mxu0 0.0
    %236 = vmatprep.subr.mxu0 0.0
    %237 = vmatpush2.msra.mxu0 0.0
    %238 = vmatprep.subr.mxu0 0.0
    %239 = vmatpush2.msra.mxu0 0.0
    %240 = vmatprep.subr.mxu0 0.0
    %241 = vmatpush2.msra.mxu0 0.0
    %242 = vmatprep.subr.mxu0 0.0
    %243 = vmatpush2.msra.mxu0 0.0
    %244 = vmatprep.subr.mxu0 0.0
    %245 = vmatpush2.msra.mxu0 0.0
    %246 = vmatprep.subr.mxu0 0.0
    %247 = vmatpush2.msra.mxu0 0.0
    %248 = vmatprep.subr.mxu0 0.0
    %249 = vmatpush2.msra.mxu0 0.0
    %250 = vmatprep.subr.mxu0 0.0
    %251 = vmatpush2.msra.mxu0 0.0
    %252 = vmatprep.subr.mxu0 0.0
    %253 = vmatpush2.msra.mxu0 0.0
    %254 = vmatprep.subr.mxu0 0.0
    %255 = vmatpush2.msra.mxu0 0.0
    %256 = vmatprep.subr.mxu0 0.0
    %257 = vmatpush2.msra.mxu0 0.0
    %258 = vmatprep.subr.mxu0 0.0
    %259 = vmatpush2.msra.mxu0 0.0
    %260 = vmatprep.subr.mxu0 0.0
    %261 = vmatpush2.msra.mxu0 0.0
    %262 = vmatprep.subr.mxu0 0.0
    %263 = vmatpush2.msra.mxu0 0.0
    %264 = vmatprep.mubr.f32.mxu0 0.0
    %265 = vmatmul.mubr.f32.gmra.mxu0 %v195
    %v266 = vpop.f32.mrf.mxu0
    %v267 = vadd.f32 %v192, %v266
    %v268 = vpop.f32.mrf.mxu0
    %269 = vmatprep.mubr.f32.mxu0 0.0
    %270 = vmatmul.mubr.f32.gmra.mxu0 %v198
    %v271 = vpop.f32.mrf.mxu0
    %v272 = vadd.f32 %v192, %v271
    %v273 = vpop.f32.mrf.mxu0
    %274 = vdwg.mxu0
    %vm275 = vcmask 130048
    %v277 = vsel %vm275, 0.0, 0
    %279 = vmatprep.subr.mxu0 0.0
    %280 = vmatpush1.msra.mxu0 0.0
    %281 = vmatprep.subr.mxu0 0.0
    %282 = vmatpush1.msra.mxu0 0.0
    %283 = vmatprep.subr.mxu0 0.0
    %284 = vmatpush1.msra.mxu0 0.0
    %285 = vmatprep.subr.mxu0 0.0
    %286 = vmatpush1.msra.mxu0 0.0
    %287 = vmatprep.subr.mxu0 0.0
    %288 = vmatpush1.msra.mxu0 0.0
    %289 = vmatprep.subr.mxu0 0.0
    %290 = vmatpush1.msra.mxu0 0.0
    %291 = vmatprep.subr.mxu0 0.0
    %292 = vmatpush1.msra.mxu0 0.0
    %293 = vmatprep.subr.mxu0 0.0
    %294 = vmatpush1.msra.mxu0 0.0
    %295 = vmatprep.subr.mxu0 0.0
    %296 = vmatpush1.msra.mxu0 0.0
    %297 = vmatprep.subr.mxu0 0.0
    %298 = vmatpush1.msra.mxu0 0.0
    %299 = vmatprep.subr.mxu0 0.0
    %300 = vmatpush1.msra.mxu0 0.0
    %301 = vmatprep.subr.mxu0 0.0
    %302 = vmatpush1.msra.mxu0 0.0
    %303 = vmatprep.subr.mxu0 0.0
    %304 = vmatpush1.msra.mxu0 0.0
    %305 = vmatprep.subr.mxu0 0.0
    %306 = vmatpush1.msra.mxu0 0.0
    %307 = vmatprep.subr.mxu0 0.0
    %308 = vmatpush1.msra.mxu0 %v68
    %309 = vmatprep.subr.mxu0 0.0
    %310 = vmatpush1.msra.mxu0 %v67
    %311 = vmatprep.subr.mxu0 0.0
    %312 = vmatpush2.msra.mxu0 0.0
    %313 = vmatprep.subr.mxu0 0.0
    %314 = vmatpush2.msra.mxu0 0.0
    %315 = vmatprep.subr.mxu0 0.0
    %316 = vmatpush2.msra.mxu0 0.0
    %317 = vmatprep.subr.mxu0 0.0
    %318 = vmatpush2.msra.mxu0 0.0
    %319 = vmatprep.subr.mxu0 0.0
    %320 = vmatpush2.msra.mxu0 0.0
    %321 = vmatprep.subr.mxu0 0.0
    %322 = vmatpush2.msra.mxu0 0.0
    %323 = vmatprep.subr.mxu0 0.0
    %324 = vmatpush2.msra.mxu0 0.0
    %325 = vmatprep.subr.mxu0 0.0
    %326 = vmatpush2.msra.mxu0 0.0
    %327 = vmatprep.subr.mxu0 0.0
    %328 = vmatpush2.msra.mxu0 0.0
    %329 = vmatprep.subr.mxu0 0.0
    %330 = vmatpush2.msra.mxu0 0.0
    %331 = vmatprep.subr.mxu0 0.0
    %332 = vmatpush2.msra.mxu0 0.0
    %333 = vmatprep.subr.mxu0 0.0
    %334 = vmatpush2.msra.mxu0 0.0
    %335 = vmatprep.subr.mxu0 0.0
    %336 = vmatpush2.msra.mxu0 0.0
    %337 = vmatprep.subr.mxu0 0.0
    %338 = vmatpush2.msra.mxu0 0.0
    %339 = vmatprep.subr.mxu0 0.0
    %340 = vmatpush2.msra.mxu0 0.0
    %341 = vmatprep.subr.mxu0 0.0
    %342 = vmatpush2.msra.mxu0 0.0
    %343 = vmatprep.mubr.f32.mxu0 0.0
    %344 = vmatmul.mubr.f32.gmra.mxu0 %v277
    %v345 = vpop.f32.mrf.mxu0
    %v346 = vadd.f32 0.0, %v345
    %v347 = vpop.f32.mrf.mxu0
    %348 = vdwg.mxu0
    %v349 = vadd.f32 %v267, %v346
    %v350 = vxor.u32 %v349, 2147483648
    %v351 = vmul.f32 %v350, 1.442695
    %v352 = vpow.pop %v351
    %v353 = vadd.f32 %v352, 1.0
    %v354 = vrcp.pop %v353
    %v355 = vmul.f32 1.0, %v354
    %v356 = vtanh.pop %v349
    %v357 = vmul.f32 %v355, 0.0
    %359 = vrot.lane.b32.xlu0 %v356, 96
    %v360 = vpop.permute.xlu0 %359
    %v362 = vmul.f32 %v355, %v360
    %364 = vrot.lane.b32.xlu0 %v362, 16
    %v365 = vpop.permute.xlu0 %364
    %v367 = vadd.f32 %v357, %v365
    %v368 = vtanh.pop %v367
    %370 = vrot.lane.b32.xlu0 %v368, 32
    %v371 = vpop.permute.xlu0 %370
    %v373 = vmul.f32 %v355, %v371
    %375 = vrot.lane.b32.xlu0 %v373, 80
    %v376 = vpop.permute.xlu0 %375
    %v377 = vsel %vm275, %v376, 0
    %379 = vmatprep.subr.mxu0 0.0
    %380 = vmatpush1.msra.mxu0 0.0
    %381 = vmatprep.subr.mxu0 0.0
    %382 = vmatpush1.msra.mxu0 0.0
    %383 = vmatprep.subr.mxu0 0.0
    %384 = vmatpush1.msra.mxu0 0.0
    %385 = vmatprep.subr.mxu0 0.0
    %386 = vmatpush1.msra.mxu0 0.0
    %387 = vmatprep.subr.mxu0 0.0
    %388 = vmatpush1.msra.mxu0 0.0
    %389 = vmatprep.subr.mxu0 0.0
    %390 = vmatpush1.msra.mxu0 0.0
    %391 = vmatprep.subr.mxu0 0.0
    %392 = vmatpush1.msra.mxu0 0.0
    %393 = vmatprep.subr.mxu0 0.0
    %394 = vmatpush1.msra.mxu0 0.0
    %395 = vmatprep.subr.mxu0 0.0
    %396 = vmatpush1.msra.mxu0 0.0
    %397 = vmatprep.subr.mxu0 0.0
    %398 = vmatpush1.msra.mxu0 0.0
    %399 = vmatprep.subr.mxu0 0.0
    %400 = vmatpush1.msra.mxu0 0.0
    %401 = vmatprep.subr.mxu0 0.0
    %402 = vmatpush1.msra.mxu0 0.0
    %403 = vmatprep.subr.mxu0 0.0
    %404 = vmatpush1.msra.mxu0 0.0
    %405 = vmatprep.subr.mxu0 0.0
    %406 = vmatpush1.msra.mxu0 0.0
    %407 = vmatprep.subr.mxu0 0.0
    %408 = vmatpush1.msra.mxu0 %v68
    %409 = vmatprep.subr.mxu0 0.0
    %410 = vmatpush1.msra.mxu0 %v67
    %411 = vmatprep.subr.mxu0 0.0
    %412 = vmatpush2.msra.mxu0 0.0
    %413 = vmatprep.subr.mxu0 0.0
    %414 = vmatpush2.msra.mxu0 0.0
    %415 = vmatprep.subr.mxu0 0.0
    %416 = vmatpush2.msra.mxu0 0.0
    %417 = vmatprep.subr.mxu0 0.0
    %418 = vmatpush2.msra.mxu0 0.0
    %419 = vmatprep.subr.mxu0 0.0
    %420 = vmatpush2.msra.mxu0 0.0
    %421 = vmatprep.subr.mxu0 0.0
    %422 = vmatpush2.msra.mxu0 0.0
    %423 = vmatprep.subr.mxu0 0.0
    %424 = vmatpush2.msra.mxu0 0.0
    %425 = vmatprep.subr.mxu0 0.0
    %426 = vmatpush2.msra.mxu0 0.0
    %427 = vmatprep.subr.mxu0 0.0
    %428 = vmatpush2.msra.mxu0 0.0
    %429 = vmatprep.subr.mxu0 0.0
    %430 = vmatpush2.msra.mxu0 0.0
    %431 = vmatprep.subr.mxu0 0.0
    %432 = vmatpush2.msra.mxu0 0.0
    %433 = vmatprep.subr.mxu0 0.0
    %434 = vmatpush2.msra.mxu0 0.0
    %435 = vmatprep.subr.mxu0 0.0
    %436 = vmatpush2.msra.mxu0 0.0
    %437 = vmatprep.subr.mxu0 0.0
    %438 = vmatpush2.msra.mxu0 0.0
    %439 = vmatprep.subr.mxu0 0.0
    %440 = vmatpush2.msra.mxu0 0.0
    %441 = vmatprep.subr.mxu0 0.0
    %442 = vmatpush2.msra.mxu0 0.0
    %443 = vmatprep.mubr.f32.mxu0 0.0
    %444 = vmatmul.mubr.f32.gmra.mxu0 %v377
    %v445 = vpop.f32.mrf.mxu0
    %v446 = vadd.f32 0.0, %v445
    %v447 = vpop.f32.mrf.mxu0
    %448 = vdwg.mxu0
    %v450 = vrot.slane %v446, 6
    %v452 = vadd.f32 %v267, %v450
    %v453 = vxor.u32 %v452, 2147483648
    %v454 = vmul.f32 %v453, 1.442695
    %v455 = vpow.pop %v454
    %v456 = vadd.f32 %v455, 1.0
    %v457 = vrcp.pop %v456
    %v458 = vmul.f32 1.0, %v457
    %v459 = vtanh.pop %v452
    %v461 = vrot.slane %v367, 6
    %v463 = vmul.f32 %v458, %v461
    %465 = vrot.lane.b32.xlu0 %v459, 96
    %v466 = vpop.permute.xlu0 %465
    %v468 = vmul.f32 %v458, %v466
    %470 = vrot.lane.b32.xlu0 %v468, 16
    %v471 = vpop.permute.xlu0 %470
    %v473 = vadd.f32 %v463, %v471
    %v474 = vtanh.pop %v473
    %476 = vrot.lane.b32.xlu0 %v474, 32
    %v477 = vpop.permute.xlu0 %476
    %v479 = vmul.f32 %v458, %v477
    %v481 = vrot.slane %v479, 2
    %482 = vrot.lane.b32.xlu0 %v481, 80
    %v483 = vpop.permute.xlu0 %482
    %v484 = vsel %vm275, %v483, 0
    %486 = vmatprep.subr.mxu0 0.0
    %487 = vmatpush1.msra.mxu0 0.0
    %488 = vmatprep.subr.mxu0 0.0
    %489 = vmatpush1.msra.mxu0 0.0
    %490 = vmatprep.subr.mxu0 0.0
    %491 = vmatpush1.msra.mxu0 0.0
    %492 = vmatprep.subr.mxu0 0.0
    %493 = vmatpush1.msra.mxu0 0.0
    %494 = vmatprep.subr.mxu0 0.0
    %495 = vmatpush1.msra.mxu0 0.0
    %496 = vmatprep.subr.mxu0 0.0
    %497 = vmatpush1.msra.mxu0 0.0
    %498 = vmatprep.subr.mxu0 0.0
    %499 = vmatpush1.msra.mxu0 0.0
    %500 = vmatprep.subr.mxu0 0.0
    %501 = vmatpush1.msra.mxu0 0.0
    %502 = vmatprep.subr.mxu0 0.0
    %503 = vmatpush1.msra.mxu0 0.0
    %504 = vmatprep.subr.mxu0 0.0
    %505 = vmatpush1.msra.mxu0 0.0
    %506 = vmatprep.subr.mxu0 0.0
    %507 = vmatpush1.msra.mxu0 0.0
    %508 = vmatprep.subr.mxu0 0.0
    %509 = vmatpush1.msra.mxu0 0.0
    %510 = vmatprep.subr.mxu0 0.0
    %511 = vmatpush1.msra.mxu0 0.0
    %512 = vmatprep.subr.mxu0 0.0
    %513 = vmatpush1.msra.mxu0 0.0
    %514 = vmatprep.subr.mxu0 0.0
    %515 = vmatpush1.msra.mxu0 %v68
    %516 = vmatprep.subr.mxu0 0.0
    %517 = vmatpush1.msra.mxu0 %v67
    %518 = vmatprep.subr.mxu0 0.0
    %519 = vmatpush2.msra.mxu0 0.0
    %520 = vmatprep.subr.mxu0 0.0
    %521 = vmatpush2.msra.mxu0 0.0
    %522 = vmatprep.subr.mxu0 0.0
    %523 = vmatpush2.msra.mxu0 0.0
    %524 = vmatprep.subr.mxu0 0.0
    %525 = vmatpush2.msra.mxu0 0.0
    %526 = vmatprep.subr.mxu0 0.0
    %527 = vmatpush2.msra.mxu0 0.0
    %528 = vmatprep.subr.mxu0 0.0
    %529 = vmatpush2.msra.mxu0 0.0
    %530 = vmatprep.subr.mxu0 0.0
    %531 = vmatpush2.msra.mxu0 0.0
    %532 = vmatprep.subr.mxu0 0.0
    %533 = vmatpush2.msra.mxu0 0.0
    %534 = vmatprep.subr.mxu0 0.0
    %535 = vmatpush2.msra.mxu0 0.0
    %536 = vmatprep.subr.mxu0 0.0
    %537 = vmatpush2.msra.mxu0 0.0
    %538 = vmatprep.subr.mxu0 0.0
    %539 = vmatpush2.msra.mxu0 0.0
    %540 = vmatprep.subr.mxu0 0.0
    %541 = vmatpush2.msra.mxu0 0.0
    %542 = vmatprep.subr.mxu0 0.0
    %543 = vmatpush2.msra.mxu0 0.0
    %544 = vmatprep.subr.mxu0 0.0
    %545 = vmatpush2.msra.mxu0 0.0
    %546 = vmatprep.subr.mxu0 0.0
    %547 = vmatpush2.msra.mxu0 0.0
    %548 = vmatprep.subr.mxu0 0.0
    %549 = vmatpush2.msra.mxu0 0.0
    %550 = vmatprep.mubr.f32.mxu0 0.0
    %551 = vmatmul.mubr.f32.gmra.mxu0 %v484
    %v552 = vpop.f32.mrf.mxu0
    %v553 = vadd.f32 0.0, %v552
    %v554 = vpop.f32.mrf.mxu0
    %555 = vdwg.mxu0
    %v557 = vrot.slane %v553, 4
    %v559 = vadd.f32 %v267, %v557
    %v560 = vxor.u32 %v559, 2147483648
    %v561 = vmul.f32 %v560, 1.442695
    %v562 = vpow.pop %v561
    %v563 = vadd.f32 %v562, 1.0
    %v564 = vrcp.pop %v563
    %v565 = vmul.f32 1.0, %v564
    %v566 = vtanh.pop %v559
    %v568 = vrot.slane %v473, 6
    %v570 = vmul.f32 %v565, %v568
    %572 = vrot.lane.b32.xlu0 %v566, 96
    %v573 = vpop.permute.xlu0 %572
    %v575 = vmul.f32 %v565, %v573
    %577 = vrot.lane.b32.xlu0 %v575, 16
    %v578 = vpop.permute.xlu0 %577
    %v580 = vadd.f32 %v570, %v578
    %v581 = vtanh.pop %v580
    %583 = vrot.lane.b32.xlu0 %v581, 32
    %v584 = vpop.permute.xlu0 %583
    %v586 = vmul.f32 %v565, %v584
    %v588 = vrot.slane %v586, 4
    %589 = vrot.lane.b32.xlu0 %v588, 80
    %v590 = vpop.permute.xlu0 %589
    %v591 = vsel %vm275, %v590, 0
    %593 = vmatprep.subr.mxu0 0.0
    %594 = vmatpush1.msra.mxu0 0.0
    %595 = vmatprep.subr.mxu0 0.0
    %596 = vmatpush1.msra.mxu0 0.0
    %597 = vmatprep.subr.mxu0 0.0
    %598 = vmatpush1.msra.mxu0 0.0
    %599 = vmatprep.subr.mxu0 0.0
    %600 = vmatpush1.msra.mxu0 0.0
    %601 = vmatprep.subr.mxu0 0.0
    %602 = vmatpush1.msra.mxu0 0.0
    %603 = vmatprep.subr.mxu0 0.0
    %604 = vmatpush1.msra.mxu0 0.0
    %605 = vmatprep.subr.mxu0 0.0
    %606 = vmatpush1.msra.mxu0 0.0
    %607 = vmatprep.subr.mxu0 0.0
    %608 = vmatpush1.msra.mxu0 0.0
    %609 = vmatprep.subr.mxu0 0.0
    %610 = vmatpush1.msra.mxu0 0.0
    %611 = vmatprep.subr.mxu0 0.0
    %612 = vmatpush1.msra.mxu0 0.0
    %613 = vmatprep.subr.mxu0 0.0
    %614 = vmatpush1.msra.mxu0 0.0
    %615 = vmatprep.subr.mxu0 0.0
    %616 = vmatpush1.msra.mxu0 0.0
    %617 = vmatprep.subr.mxu0 0.0
    %618 = vmatpush1.msra.mxu0 0.0
    %619 = vmatprep.subr.mxu0 0.0
    %620 = vmatpush1.msra.mxu0 0.0
    %621 = vmatprep.subr.mxu0 0.0
    %622 = vmatpush1.msra.mxu0 %v68
    %623 = vmatprep.subr.mxu0 0.0
    %624 = vmatpush1.msra.mxu0 %v67
    %625 = vmatprep.subr.mxu0 0.0
    %626 = vmatpush2.msra.mxu0 0.0
    %627 = vmatprep.subr.mxu0 0.0
    %628 = vmatpush2.msra.mxu0 0.0
    %629 = vmatprep.subr.mxu0 0.0
    %630 = vmatpush2.msra.mxu0 0.0
    %631 = vmatprep.subr.mxu0 0.0
    %632 = vmatpush2.msra.mxu0 0.0
    %633 = vmatprep.subr.mxu0 0.0
    %634 = vmatpush2.msra.mxu0 0.0
    %635 = vmatprep.subr.mxu0 0.0
    %636 = vmatpush2.msra.mxu0 0.0
    %637 = vmatprep.subr.mxu0 0.0
    %638 = vmatpush2.msra.mxu0 0.0
    %639 = vmatprep.subr.mxu0 0.0
    %640 = vmatpush2.msra.mxu0 0.0
    %641 = vmatprep.subr.mxu0 0.0
    %642 = vmatpush2.msra.mxu0 0.0
    %643 = vmatprep.subr.mxu0 0.0
    %644 = vmatpush2.msra.mxu0 0.0
    %645 = vmatprep.subr.mxu0 0.0
    %646 = vmatpush2.msra.mxu0 0.0
    %647 = vmatprep.subr.mxu0 0.0
    %648 = vmatpush2.msra.mxu0 0.0
    %649 = vmatprep.subr.mxu0 0.0
    %650 = vmatpush2.msra.mxu0 0.0
    %651 = vmatprep.subr.mxu0 0.0
    %652 = vmatpush2.msra.mxu0 0.0
    %653 = vmatprep.subr.mxu0 0.0
    %654 = vmatpush2.msra.mxu0 0.0
    %655 = vmatprep.subr.mxu0 0.0
    %656 = vmatpush2.msra.mxu0 0.0
    %657 = vmatprep.mubr.f32.mxu0 0.0
    %658 = vmatmul.mubr.f32.gmra.mxu0 %v591
    %v659 = vpop.f32.mrf.mxu0
    %v660 = vadd.f32 0.0, %v659
    %v661 = vpop.f32.mrf.mxu0
    %662 = vdwg.mxu0
    %v664 = vrot.slane %v660, 2
    %v666 = vadd.f32 %v267, %v664
    %v667 = vxor.u32 %v666, 2147483648
    %v668 = vmul.f32 %v667, 1.442695
    %v669 = vpow.pop %v668
    %v670 = vadd.f32 %v669, 1.0
    %v671 = vrcp.pop %v670
    %v672 = vmul.f32 1.0, %v671
    %v673 = vtanh.pop %v666
    %v675 = vrot.slane %v580, 6
    %v677 = vmul.f32 %v672, %v675
    %679 = vrot.lane.b32.xlu0 %v673, 96
    %v680 = vpop.permute.xlu0 %679
    %v682 = vmul.f32 %v672, %v680
    %684 = vrot.lane.b32.xlu0 %v682, 16
    %v685 = vpop.permute.xlu0 %684
    %v687 = vadd.f32 %v677, %v685
    %v688 = vtanh.pop %v687
    %690 = vrot.lane.b32.xlu0 %v688, 32
    %v691 = vpop.permute.xlu0 %690
    %v693 = vmul.f32 %v672, %v691
    %v695 = vrot.slane %v693, 6
    %696 = vrot.lane.b32.xlu0 %v695, 80
    %v697 = vpop.permute.xlu0 %696
    %v698 = vsel %vm275, %v697, 0
    %700 = vmatprep.subr.mxu0 0.0
    %701 = vmatpush1.msra.mxu0 0.0
    %702 = vmatprep.subr.mxu0 0.0
    %703 = vmatpush1.msra.mxu0 0.0
    %704 = vmatprep.subr.mxu0 0.0
    %705 = vmatpush1.msra.mxu0 0.0
    %706 = vmatprep.subr.mxu0 0.0
    %707 = vmatpush1.msra.mxu0 0.0
    %708 = vmatprep.subr.mxu0 0.0
    %709 = vmatpush1.msra.mxu0 0.0
    %710 = vmatprep.subr.mxu0 0.0
    %711 = vmatpush1.msra.mxu0 0.0
    %712 = vmatprep.subr.mxu0 0.0
    %713 = vmatpush1.msra.mxu0 0.0
    %714 = vmatprep.subr.mxu0 0.0
    %715 = vmatpush1.msra.mxu0 0.0
    %716 = vmatprep.subr.mxu0 0.0
    %717 = vmatpush1.msra.mxu0 0.0
    %718 = vmatprep.subr.mxu0 0.0
    %719 = vmatpush1.msra.mxu0 0.0
    %720 = vmatprep.subr.mxu0 0.0
    %721 = vmatpush1.msra.mxu0 0.0
    %722 = vmatprep.subr.mxu0 0.0
    %723 = vmatpush1.msra.mxu0 0.0
    %724 = vmatprep.subr.mxu0 0.0
    %725 = vmatpush1.msra.mxu0 0.0
    %726 = vmatprep.subr.mxu0 0.0
    %727 = vmatpush1.msra.mxu0 0.0
    %728 = vmatprep.subr.mxu0 0.0
    %729 = vmatpush1.msra.mxu0 %v68
    %730 = vmatprep.subr.mxu0 0.0
    %731 = vmatpush1.msra.mxu0 %v67
    %732 = vmatprep.subr.mxu0 0.0
    %733 = vmatpush2.msra.mxu0 0.0
    %734 = vmatprep.subr.mxu0 0.0
    %735 = vmatpush2.msra.mxu0 0.0
    %736 = vmatprep.subr.mxu0 0.0
    %737 = vmatpush2.msra.mxu0 0.0
    %738 = vmatprep.subr.mxu0 0.0
    %739 = vmatpush2.msra.mxu0 0.0
    %740 = vmatprep.subr.mxu0 0.0
    %741 = vmatpush2.msra.mxu0 0.0
    %742 = vmatprep.subr.mxu0 0.0
    %743 = vmatpush2.msra.mxu0 0.0
    %744 = vmatprep.subr.mxu0 0.0
    %745 = vmatpush2.msra.mxu0 0.0
    %746 = vmatprep.subr.mxu0 0.0
    %747 = vmatpush2.msra.mxu0 0.0
    %748 = vmatprep.subr.mxu0 0.0
    %749 = vmatpush2.msra.mxu0 0.0
    %750 = vmatprep.subr.mxu0 0.0
    %751 = vmatpush2.msra.mxu0 0.0
    %752 = vmatprep.subr.mxu0 0.0
    %753 = vmatpush2.msra.mxu0 0.0
    %754 = vmatprep.subr.mxu0 0.0
    %755 = vmatpush2.msra.mxu0 0.0
    %756 = vmatprep.subr.mxu0 0.0
    %757 = vmatpush2.msra.mxu0 0.0
    %758 = vmatprep.subr.mxu0 0.0
    %759 = vmatpush2.msra.mxu0 0.0
    %760 = vmatprep.subr.mxu0 0.0
    %761 = vmatpush2.msra.mxu0 0.0
    %762 = vmatprep.subr.mxu0 0.0
    %763 = vmatpush2.msra.mxu0 0.0
    %764 = vmatprep.mubr.f32.mxu0 0.0
    %765 = vmatmul.mubr.f32.gmra.mxu0 %v698
    %v766 = vpop.f32.mrf.mxu0
    %v767 = vadd.f32 0.0, %v766
    %v768 = vpop.f32.mrf.mxu0
    %769 = vdwg.mxu0
    %v770 = vadd.f32 %v272, %v767
    %v771 = vxor.u32 %v770, 2147483648
    %v772 = vmul.f32 %v771, 1.442695
    %v773 = vpow.pop %v772
    %v774 = vadd.f32 %v773, 1.0
    %v775 = vrcp.pop %v774
    %v776 = vmul.f32 1.0, %v775
    %v777 = vtanh.pop %v770
    %v779 = vrot.slane %v687, 6
    %v781 = vmul.f32 %v776, %v779
    %783 = vrot.lane.b32.xlu0 %v777, 96
    %v784 = vpop.permute.xlu0 %783
    %v786 = vmul.f32 %v776, %v784
    %788 = vrot.lane.b32.xlu0 %v786, 16
    %v789 = vpop.permute.xlu0 %788
    %v791 = vadd.f32 %v781, %v789
    %v792 = vtanh.pop %v791
    %794 = vrot.lane.b32.xlu0 %v792, 32
    %v795 = vpop.permute.xlu0 %794
    %v797 = vmul.f32 %v776, %v795
    %799 = vrot.lane.b32.xlu0 %v797, 80
    %v800 = vpop.permute.xlu0 %799
    %v801 = vsel %vm275, %v800, 0
    %803 = vmatprep.subr.mxu0 0.0
    %804 = vmatpush1.msra.mxu0 0.0
    %805 = vmatprep.subr.mxu0 0.0
    %806 = vmatpush1.msra.mxu0 0.0
    %807 = vmatprep.subr.mxu0 0.0
    %808 = vmatpush1.msra.mxu0 0.0
    %809 = vmatprep.subr.mxu0 0.0
    %810 = vmatpush1.msra.mxu0 0.0
    %811 = vmatprep.subr.mxu0 0.0
    %812 = vmatpush1.msra.mxu0 0.0
    %813 = vmatprep.subr.mxu0 0.0
    %814 = vmatpush1.msra.mxu0 0.0
    %815 = vmatprep.subr.mxu0 0.0
    %816 = vmatpush1.msra.mxu0 0.0
    %817 = vmatprep.subr.mxu0 0.0
    %818 = vmatpush1.msra.mxu0 0.0
    %819 = vmatprep.subr.mxu0 0.0
    %820 = vmatpush1.msra.mxu0 0.0
    %821 = vmatprep.subr.mxu0 0.0
    %822 = vmatpush1.msra.mxu0 0.0
    %823 = vmatprep.subr.mxu0 0.0
    %824 = vmatpush1.msra.mxu0 0.0
    %825 = vmatprep.subr.mxu0 0.0
    %826 = vmatpush1.msra.mxu0 0.0
    %827 = vmatprep.subr.mxu0 0.0
    %828 = vmatpush1.msra.mxu0 0.0
    %829 = vmatprep.subr.mxu0 0.0
    %830 = vmatpush1.msra.mxu0 0.0
    %831 = vmatprep.subr.mxu0 0.0
    %832 = vmatpush1.msra.mxu0 %v68
    %833 = vmatprep.subr.mxu0 0.0
    %834 = vmatpush1.msra.mxu0 %v67
    %835 = vmatprep.subr.mxu0 0.0
    %836 = vmatpush2.msra.mxu0 0.0
    %837 = vmatprep.subr.mxu0 0.0
    %838 = vmatpush2.msra.mxu0 0.0
    %839 = vmatprep.subr.mxu0 0.0
    %840 = vmatpush2.msra.mxu0 0.0
    %841 = vmatprep.subr.mxu0 0.0
    %842 = vmatpush2.msra.mxu0 0.0
    %843 = vmatprep.subr.mxu0 0.0
    %844 = vmatpush2.msra.mxu0 0.0
    %845 = vmatprep.subr.mxu0 0.0
    %846 = vmatpush2.msra.mxu0 0.0
    %847 = vmatprep.subr.mxu0 0.0
    %848 = vmatpush2.msra.mxu0 0.0
    %849 = vmatprep.subr.mxu0 0.0
    %850 = vmatpush2.msra.mxu0 0.0
    %851 = vmatprep.subr.mxu0 0.0
    %852 = vmatpush2.msra.mxu0 0.0
    %853 = vmatprep.subr.mxu0 0.0
    %854 = vmatpush2.msra.mxu0 0.0
    %855 = vmatprep.subr.mxu0 0.0
    %856 = vmatpush2.msra.mxu0 0.0
    %857 = vmatprep.subr.mxu0 0.0
    %858 = vmatpush2.msra.mxu0 0.0
    %859 = vmatprep.subr.mxu0 0.0
    %860 = vmatpush2.msra.mxu0 0.0
    %861 = vmatprep.subr.mxu0 0.0
    %862 = vmatpush2.msra.mxu0 0.0
    %863 = vmatprep.subr.mxu0 0.0
    %864 = vmatpush2.msra.mxu0 0.0
    %865 = vmatprep.subr.mxu0 0.0
    %866 = vmatpush2.msra.mxu0 0.0
    %867 = vmatprep.mubr.f32.mxu0 0.0
    %868 = vmatmul.mubr.f32.gmra.mxu0 %v801
    %v869 = vpop.f32.mrf.mxu0
    %v870 = vadd.f32 0.0, %v869
    %v871 = vpop.f32.mrf.mxu0
    %872 = vdwg.mxu0
    %v874 = vrot.slane %v870, 6
    %v876 = vadd.f32 %v272, %v874
    %v877 = vxor.u32 %v876, 2147483648
    %v878 = vmul.f32 %v877, 1.442695
    %v879 = vpow.pop %v878
    %v880 = vadd.f32 %v879, 1.0
    %v881 = vrcp.pop %v880
    %v882 = vmul.f32 1.0, %v881
    %v883 = vtanh.pop %v876
    %v885 = vrot.slane %v791, 6
    %v887 = vmul.f32 %v882, %v885
    %889 = vrot.lane.b32.xlu0 %v883, 96
    %v890 = vpop.permute.xlu0 %889
    %v892 = vmul.f32 %v882, %v890
    %894 = vrot.lane.b32.xlu0 %v892, 16
    %v895 = vpop.permute.xlu0 %894
    %v897 = vadd.f32 %v887, %v895
    %v898 = vtanh.pop %v897
    %900 = vrot.lane.b32.xlu0 %v898, 32
    %v901 = vpop.permute.xlu0 %900
    %v903 = vmul.f32 %v882, %v901
    %v905 = vrot.slane %v903, 2
    %906 = vrot.lane.b32.xlu0 %v905, 80
    %v907 = vpop.permute.xlu0 %906
    %v908 = vsel %vm275, %v907, 0
    %910 = vmatprep.subr.mxu0 0.0
    %911 = vmatpush1.msra.mxu0 0.0
    %912 = vmatprep.subr.mxu0 0.0
    %913 = vmatpush1.msra.mxu0 0.0
    %914 = vmatprep.subr.mxu0 0.0
    %915 = vmatpush1.msra.mxu0 0.0
    %916 = vmatprep.subr.mxu0 0.0
    %917 = vmatpush1.msra.mxu0 0.0
    %918 = vmatprep.subr.mxu0 0.0
    %919 = vmatpush1.msra.mxu0 0.0
    %920 = vmatprep.subr.mxu0 0.0
    %921 = vmatpush1.msra.mxu0 0.0
    %922 = vmatprep.subr.mxu0 0.0
    %923 = vmatpush1.msra.mxu0 0.0
    %924 = vmatprep.subr.mxu0 0.0
    %925 = vmatpush1.msra.mxu0 0.0
    %926 = vmatprep.subr.mxu0 0.0
    %927 = vmatpush1.msra.mxu0 0.0
    %928 = vmatprep.subr.mxu0 0.0
    %929 = vmatpush1.msra.mxu0 0.0
    %930 = vmatprep.subr.mxu0 0.0
    %931 = vmatpush1.msra.mxu0 0.0
    %932 = vmatprep.subr.mxu0 0.0
    %933 = vmatpush1.msra.mxu0 0.0
    %934 = vmatprep.subr.mxu0 0.0
    %935 = vmatpush1.msra.mxu0 0.0
    %936 = vmatprep.subr.mxu0 0.0
    %937 = vmatpush1.msra.mxu0 0.0
    %938 = vmatprep.subr.mxu0 0.0
    %939 = vmatpush1.msra.mxu0 %v68
    %940 = vmatprep.subr.mxu0 0.0
    %941 = vmatpush1.msra.mxu0 %v67
    %942 = vmatprep.subr.mxu0 0.0
    %943 = vmatpush2.msra.mxu0 0.0
    %944 = vmatprep.subr.mxu0 0.0
    %945 = vmatpush2.msra.mxu0 0.0
    %946 = vmatprep.subr.mxu0 0.0
    %947 = vmatpush2.msra.mxu0 0.0
    %948 = vmatprep.subr.mxu0 0.0
    %949 = vmatpush2.msra.mxu0 0.0
    %950 = vmatprep.subr.mxu0 0.0
    %951 = vmatpush2.msra.mxu0 0.0
    %952 = vmatprep.subr.mxu0 0.0
    %953 = vmatpush2.msra.mxu0 0.0
    %954 = vmatprep.subr.mxu0 0.0
    %955 = vmatpush2.msra.mxu0 0.0
    %956 = vmatprep.subr.mxu0 0.0
    %957 = vmatpush2.msra.mxu0 0.0
    %958 = vmatprep.subr.mxu0 0.0
    %959 = vmatpush2.msra.mxu0 0.0
    %960 = vmatprep.subr.mxu0 0.0
    %961 = vmatpush2.msra.mxu0 0.0
    %962 = vmatprep.subr.mxu0 0.0
    %963 = vmatpush2.msra.mxu0 0.0
    %964 = vmatprep.subr.mxu0 0.0
    %965 = vmatpush2.msra.mxu0 0.0
    %966 = vmatprep.subr.mxu0 0.0
    %967 = vmatpush2.msra.mxu0 0.0
    %968 = vmatprep.subr.mxu0 0.0
    %969 = vmatpush2.msra.mxu0 0.0
    %970 = vmatprep.subr.mxu0 0.0
    %971 = vmatpush2.msra.mxu0 0.0
    %972 = vmatprep.subr.mxu0 0.0
    %973 = vmatpush2.msra.mxu0 0.0
    %974 = vmatprep.mubr.f32.mxu0 0.0
    %975 = vmatmul.mubr.f32.gmra.mxu0 %v908
    %v976 = vpop.f32.mrf.mxu0
    %v977 = vadd.f32 0.0, %v976
    %v978 = vpop.f32.mrf.mxu0
    %979 = vdwg.mxu0
    %v981 = vrot.slane %v977, 4
    %v983 = vadd.f32 %v272, %v981
    %v984 = vxor.u32 %v983, 2147483648
    %v985 = vmul.f32 %v984, 1.442695
    %v986 = vpow.pop %v985
    %v987 = vadd.f32 %v986, 1.0
    %v988 = vrcp.pop %v987
    %v989 = vmul.f32 1.0, %v988
    %v990 = vtanh.pop %v983
    %v992 = vrot.slane %v897, 6
    %v994 = vmul.f32 %v989, %v992
    %996 = vrot.lane.b32.xlu0 %v990, 96
    %v997 = vpop.permute.xlu0 %996
    %v999 = vmul.f32 %v989, %v997
    %1001 = vrot.lane.b32.xlu0 %v999, 16
    %v1002 = vpop.permute.xlu0 %1001
    %v1004 = vadd.f32 %v994, %v1002
    %v1005 = vtanh.pop %v1004
    %1007 = vrot.lane.b32.xlu0 %v1005, 32
    %v1008 = vpop.permute.xlu0 %1007
    %v1010 = vmul.f32 %v989, %v1008
    %v1012 = vrot.slane %v1010, 4
    %1013 = vrot.lane.b32.xlu0 %v1012, 80
    %v1014 = vpop.permute.xlu0 %1013
    %v1015 = vsel %vm275, %v1014, 0
    %1017 = vmatprep.subr.mxu0 0.0
    %1018 = vmatpush1.msra.mxu0 0.0
    %1019 = vmatprep.subr.mxu0 0.0
    %1020 = vmatpush1.msra.mxu0 0.0
    %1021 = vmatprep.subr.mxu0 0.0
    %1022 = vmatpush1.msra.mxu0 0.0
    %1023 = vmatprep.subr.mxu0 0.0
    %1024 = vmatpush1.msra.mxu0 0.0
    %1025 = vmatprep.subr.mxu0 0.0
    %1026 = vmatpush1.msra.mxu0 0.0
    %1027 = vmatprep.subr.mxu0 0.0
    %1028 = vmatpush1.msra.mxu0 0.0
    %1029 = vmatprep.subr.mxu0 0.0
    %1030 = vmatpush1.msra.mxu0 0.0
    %1031 = vmatprep.subr.mxu0 0.0
    %1032 = vmatpush1.msra.mxu0 0.0
    %1033 = vmatprep.subr.mxu0 0.0
    %1034 = vmatpush1.msra.mxu0 0.0
    %1035 = vmatprep.subr.mxu0 0.0
    %1036 = vmatpush1.msra.mxu0 0.0
    %1037 = vmatprep.subr.mxu0 0.0
    %1038 = vmatpush1.msra.mxu0 0.0
    %1039 = vmatprep.subr.mxu0 0.0
    %1040 = vmatpush1.msra.mxu0 0.0
    %1041 = vmatprep.subr.mxu0 0.0
    %1042 = vmatpush1.msra.mxu0 0.0
    %1043 = vmatprep.subr.mxu0 0.0
    %1044 = vmatpush1.msra.mxu0 0.0
    %1045 = vmatprep.subr.mxu0 0.0
    %1046 = vmatpush1.msra.mxu0 %v68
    %1047 = vmatprep.subr.mxu0 0.0
    %1048 = vmatpush1.msra.mxu0 %v67
    %1049 = vmatprep.subr.mxu0 0.0
    %1050 = vmatpush2.msra.mxu0 0.0
    %1051 = vmatprep.subr.mxu0 0.0
    %1052 = vmatpush2.msra.mxu0 0.0
    %1053 = vmatprep.subr.mxu0 0.0
    %1054 = vmatpush2.msra.mxu0 0.0
    %1055 = vmatprep.subr.mxu0 0.0
    %1056 = vmatpush2.msra.mxu0 0.0
    %1057 = vmatprep.subr.mxu0 0.0
    %1058 = vmatpush2.msra.mxu0 0.0
    %1059 = vmatprep.subr.mxu0 0.0
    %1060 = vmatpush2.msra.mxu0 0.0
    %1061 = vmatprep.subr.mxu0 0.0
    %1062 = vmatpush2.msra.mxu0 0.0
    %1063 = vmatprep.subr.mxu0 0.0
    %1064 = vmatpush2.msra.mxu0 0.0
    %1065 = vmatprep.subr.mxu0 0.0
    %1066 = vmatpush2.msra.mxu0 0.0
    %1067 = vmatprep.subr.mxu0 0.0
    %1068 = vmatpush2.msra.mxu0 0.0
    %1069 = vmatprep.subr.mxu0 0.0
    %1070 = vmatpush2.msra.mxu0 0.0
    %1071 = vmatprep.subr.mxu0 0.0
    %1072 = vmatpush2.msra.mxu0 0.0
    %1073 = vmatprep.subr.mxu0 0.0
    %1074 = vmatpush2.msra.mxu0 0.0
    %1075 = vmatprep.subr.mxu0 0.0
    %1076 = vmatpush2.msra.mxu0 0.0
    %1077 = vmatprep.subr.mxu0 0.0
    %1078 = vmatpush2.msra.mxu0 0.0
    %1079 = vmatprep.subr.mxu0 0.0
    %1080 = vmatpush2.msra.mxu0 0.0
    %1081 = vmatprep.mubr.f32.mxu0 0.0
    %1082 = vmatmul.mubr.f32.gmra.mxu0 %v1015
    %v1083 = vpop.f32.mrf.mxu0
    %v1084 = vadd.f32 0.0, %v1083
    %v1085 = vpop.f32.mrf.mxu0
    %1086 = vdwg.mxu0
    %v1088 = vrot.slane %v1084, 2
    %v1090 = vadd.f32 %v272, %v1088
    %v1091 = vxor.u32 %v1090, 2147483648
    %v1092 = vmul.f32 %v1091, 1.442695
    %v1093 = vpow.pop %v1092
    %v1094 = vadd.f32 %v1093, 1.0
    %v1095 = vrcp.pop %v1094
    %v1096 = vmul.f32 1.0, %v1095
    %v1097 = vtanh.pop %v1090
    %v1099 = vrot.slane %v1004, 6
    %v1101 = vmul.f32 %v1096, %v1099
    %1103 = vrot.lane.b32.xlu0 %v1097, 96
    %v1104 = vpop.permute.xlu0 %1103
    %v1106 = vmul.f32 %v1096, %v1104
    %1108 = vrot.lane.b32.xlu0 %v1106, 16
    %v1109 = vpop.permute.xlu0 %1108
    %v1111 = vadd.f32 %v1101, %v1109
    %v1112 = vtanh.pop %v1111
    %1114 = vrot.lane.b32.xlu0 %v1112, 32
    %v1115 = vpop.permute.xlu0 %1114
    %v1117 = vmul.f32 %v1096, %v1115
    %v1118 = vsel %vm170, %v373, %v479
    %v1119 = vsel %vm174, %v1118, %v586
    %v1120 = vsel %vm178, %v1119, %v693
    %v1121 = vsel %vm170, %v797, %v903
    %v1122 = vsel %vm174, %v1121, %v1010
    %v1123 = vsel %vm178, %v1122, %v1117
    %v1124 = vlaneseq
    %v1125 = vshrl.u32 %v1124, 7
    %v1126 = vsub.s32 0, %v1125
    %v1127 = vrot.slane %v76, %v1126
    %1130 = vrot.lane.b32.xlu0 %v1120, 80
    %v1131 = vpop.permute.xlu0 %1130
    %1132 = vrot.lane.b32.xlu0 %v1123, 80
    %v1133 = vpop.permute.xlu0 %1132
    %v1134 = vsel %vm275, %v1131, 0
    %v1136 = vsel %vm275, %v1133, 0
    %1138 = vmatprep.subr.mxu0 0.0
    %1139 = vmatpush1.msra.mxu0 0.0
    %1140 = vmatprep.subr.mxu0 0.0
    %1141 = vmatpush1.msra.mxu0 0.0
    %1142 = vmatprep.subr.mxu0 0.0
    %1143 = vmatpush1.msra.mxu0 0.0
    %1144 = vmatprep.subr.mxu0 0.0
    %1145 = vmatpush1.msra.mxu0 0.0
    %1146 = vmatprep.subr.mxu0 0.0
    %1147 = vmatpush1.msra.mxu0 0.0
    %1148 = vmatprep.subr.mxu0 0.0
    %1149 = vmatpush1.msra.mxu0 0.0
    %1150 = vmatprep.subr.mxu0 0.0
    %1151 = vmatpush1.msra.mxu0 0.0
    %1152 = vmatprep.subr.mxu0 0.0
    %1153 = vmatpush1.msra.mxu0 0.0
    %1154 = vmatprep.subr.mxu0 0.0
    %1155 = vmatpush1.msra.mxu0 0.0
    %1156 = vmatprep.subr.mxu0 0.0
    %1157 = vmatpush1.msra.mxu0 0.0
    %1158 = vmatprep.subr.mxu0 0.0
    %1159 = vmatpush1.msra.mxu0 0.0
    %1160 = vmatprep.subr.mxu0 0.0
    %1161 = vmatpush1.msra.mxu0 0.0
    %1162 = vmatprep.subr.mxu0 0.0
    %1163 = vmatpush1.msra.mxu0 0.0
    %1164 = vmatprep.subr.mxu0 0.0
    %1165 = vmatpush1.msra.mxu0 0.0
    %1166 = vmatprep.subr.mxu0 0.0
    %1167 = vmatpush1.msra.mxu0 %v70
    %1168 = vmatprep.subr.mxu0 0.0
    %1169 = vmatpush1.msra.mxu0 %v69
    %1170 = vmatprep.subr.mxu0 0.0
    %1171 = vmatpush2.msra.mxu0 0.0
    %1172 = vmatprep.subr.mxu0 0.0
    %1173 = vmatpush2.msra.mxu0 0.0
    %1174 = vmatprep.subr.mxu0 0.0
    %1175 = vmatpush2.msra.mxu0 0.0
    %1176 = vmatprep.subr.mxu0 0.0
    %1177 = vmatpush2.msra.mxu0 0.0
    %1178 = vmatprep.subr.mxu0 0.0
    %1179 = vmatpush2.msra.mxu0 0.0
    %1180 = vmatprep.subr.mxu0 0.0
    %1181 = vmatpush2.msra.mxu0 0.0
    %1182 = vmatprep.subr.mxu0 0.0
    %1183 = vmatpush2.msra.mxu0 0.0
    %1184 = vmatprep.subr.mxu0 0.0
    %1185 = vmatpush2.msra.mxu0 0.0
    %1186 = vmatprep.subr.mxu0 0.0
    %1187 = vmatpush2.msra.mxu0 0.0
    %1188 = vmatprep.subr.mxu0 0.0
    %1189 = vmatpush2.msra.mxu0 0.0
    %1190 = vmatprep.subr.mxu0 0.0
    %1191 = vmatpush2.msra.mxu0 0.0
    %1192 = vmatprep.subr.mxu0 0.0
    %1193 = vmatpush2.msra.mxu0 0.0
    %1194 = vmatprep.subr.mxu0 0.0
    %1195 = vmatpush2.msra.mxu0 0.0
    %1196 = vmatprep.subr.mxu0 0.0
    %1197 = vmatpush2.msra.mxu0 0.0
    %1198 = vmatprep.subr.mxu0 0.0
    %1199 = vmatpush2.msra.mxu0 0.0
    %1200 = vmatprep.subr.mxu0 0.0
    %1201 = vmatpush2.msra.mxu0 0.0
    %1202 = vmatprep.mubr.f32.mxu0 0.0
    %1203 = vmatmul.mubr.f32.gmra.mxu0 %v1134
    %v1204 = vpop.f32.mrf.mxu0
    %v1205 = vadd.f32 %v1127, %v1204
    %v1206 = vpop.f32.mrf.mxu0
    %1207 = vmatprep.mubr.f32.mxu0 0.0
    %1208 = vmatmul.mubr.f32.gmra.mxu0 %v1136
    %v1209 = vpop.f32.mrf.mxu0
    %v1210 = vadd.f32 %v1127, %v1209
    %v1211 = vpop.f32.mrf.mxu0
    %1212 = vdwg.mxu0
    %1213 = vmatprep.subr.mxu0 0.0
    %1214 = vmatpush1.msra.mxu0 0.0
    %1215 = vmatprep.subr.mxu0 0.0
    %1216 = vmatpush1.msra.mxu0 0.0
    %1217 = vmatprep.subr.mxu0 0.0
    %1218 = vmatpush1.msra.mxu0 0.0
    %1219 = vmatprep.subr.mxu0 0.0
    %1220 = vmatpush1.msra.mxu0 0.0
    %1221 = vmatprep.subr.mxu0 0.0
    %1222 = vmatpush1.msra.mxu0 0.0
    %1223 = vmatprep.subr.mxu0 0.0
    %1224 = vmatpush1.msra.mxu0 0.0
    %1225 = vmatprep.subr.mxu0 0.0
    %1226 = vmatpush1.msra.mxu0 0.0
    %1227 = vmatprep.subr.mxu0 0.0
    %1228 = vmatpush1.msra.mxu0 0.0
    %1229 = vmatprep.subr.mxu0 0.0
    %1230 = vmatpush1.msra.mxu0 0.0
    %1231 = vmatprep.subr.mxu0 0.0
    %1232 = vmatpush1.msra.mxu0 0.0
    %1233 = vmatprep.subr.mxu0 0.0
    %1234 = vmatpush1.msra.mxu0 0.0
    %1235 = vmatprep.subr.mxu0 0.0
    %1236 = vmatpush1.msra.mxu0 0.0
    %1237 = vmatprep.subr.mxu0 0.0
    %1238 = vmatpush1.msra.mxu0 0.0
    %1239 = vmatprep.subr.mxu0 0.0
    %1240 = vmatpush1.msra.mxu0 0.0
    %1241 = vmatprep.subr.mxu0 0.0
    %1242 = vmatpush1.msra.mxu0 %v72
    %1243 = vmatprep.subr.mxu0 0.0
    %1244 = vmatpush1.msra.mxu0 %v71
    %1245 = vmatprep.subr.mxu0 0.0
    %1246 = vmatpush2.msra.mxu0 0.0
    %1247 = vmatprep.subr.mxu0 0.0
    %1248 = vmatpush2.msra.mxu0 0.0
    %1249 = vmatprep.subr.mxu0 0.0
    %1250 = vmatpush2.msra.mxu0 0.0
    %1251 = vmatprep.subr.mxu0 0.0
    %1252 = vmatpush2.msra.mxu0 0.0
    %1253 = vmatprep.subr.mxu0 0.0
    %1254 = vmatpush2.msra.mxu0 0.0
    %1255 = vmatprep.subr.mxu0 0.0
    %1256 = vmatpush2.msra.mxu0 0.0
    %1257 = vmatprep.subr.mxu0 0.0
    %1258 = vmatpush2.msra.mxu0 0.0
    %1259 = vmatprep.subr.mxu0 0.0
    %1260 = vmatpush2.msra.mxu0 0.0
    %1261 = vmatprep.subr.mxu0 0.0
    %1262 = vmatpush2.msra.mxu0 0.0
    %1263 = vmatprep.subr.mxu0 0.0
    %1264 = vmatpush2.msra.mxu0 0.0
    %1265 = vmatprep.subr.mxu0 0.0
    %1266 = vmatpush2.msra.mxu0 0.0
    %1267 = vmatprep.subr.mxu0 0.0
    %1268 = vmatpush2.msra.mxu0 0.0
    %1269 = vmatprep.subr.mxu0 0.0
    %1270 = vmatpush2.msra.mxu0 0.0
    %1271 = vmatprep.subr.mxu0 0.0
    %1272 = vmatpush2.msra.mxu0 0.0
    %1273 = vmatprep.subr.mxu0 0.0
    %1274 = vmatpush2.msra.mxu0 0.0
    %1275 = vmatprep.subr.mxu0 0.0
    %1276 = vmatpush2.msra.mxu0 0.0
    %1277 = vmatprep.mubr.f32.mxu0 0.0
    %1278 = vmatmul.mubr.f32.gmra.mxu0 %v277
    %v1279 = vpop.f32.mrf.mxu0
    %v1280 = vadd.f32 0.0, %v1279
    %v1281 = vpop.f32.mrf.mxu0
    %1282 = vdwg.mxu0
    %v1283 = vadd.f32 %v1205, %v1280
    %v1284 = vxor.u32 %v1283, 2147483648
    %v1285 = vmul.f32 %v1284, 1.442695
    %v1286 = vpow.pop %v1285
    %v1287 = vadd.f32 %v1286, 1.0
    %v1288 = vrcp.pop %v1287
    %v1289 = vmul.f32 1.0, %v1288
    %v1290 = vtanh.pop %v1283
    %v1291 = vmul.f32 %v1289, 0.0
    %1293 = vrot.lane.b32.xlu0 %v1290, 96
    %v1294 = vpop.permute.xlu0 %1293
    %v1296 = vmul.f32 %v1289, %v1294
    %1298 = vrot.lane.b32.xlu0 %v1296, 16
    %v1299 = vpop.permute.xlu0 %1298
    %v1301 = vadd.f32 %v1291, %v1299
    %v1302 = vtanh.pop %v1301
    %1304 = vrot.lane.b32.xlu0 %v1302, 32
    %v1305 = vpop.permute.xlu0 %1304
    %v1307 = vmul.f32 %v1289, %v1305
    %1309 = vrot.lane.b32.xlu0 %v1307, 80
    %v1310 = vpop.permute.xlu0 %1309
    %v1311 = vsel %vm275, %v1310, 0
    %1313 = vmatprep.subr.mxu0 0.0
    %1314 = vmatpush1.msra.mxu0 0.0
    %1315 = vmatprep.subr.mxu0 0.0
    %1316 = vmatpush1.msra.mxu0 0.0
    %1317 = vmatprep.subr.mxu0 0.0
    %1318 = vmatpush1.msra.mxu0 0.0
    %1319 = vmatprep.subr.mxu0 0.0
    %1320 = vmatpush1.msra.mxu0 0.0
    %1321 = vmatprep.subr.mxu0 0.0
    %1322 = vmatpush1.msra.mxu0 0.0
    %1323 = vmatprep.subr.mxu0 0.0
    %1324 = vmatpush1.msra.mxu0 0.0
    %1325 = vmatprep.subr.mxu0 0.0
    %1326 = vmatpush1.msra.mxu0 0.0
    %1327 = vmatprep.subr.mxu0 0.0
    %1328 = vmatpush1.msra.mxu0 0.0
    %1329 = vmatprep.subr.mxu0 0.0
    %1330 = vmatpush1.msra.mxu0 0.0
    %1331 = vmatprep.subr.mxu0 0.0
    %1332 = vmatpush1.msra.mxu0 0.0
    %1333 = vmatprep.subr.mxu0 0.0
    %1334 = vmatpush1.msra.mxu0 0.0
    %1335 = vmatprep.subr.mxu0 0.0
    %1336 = vmatpush1.msra.mxu0 0.0
    %1337 = vmatprep.subr.mxu0 0.0
    %1338 = vmatpush1.msra.mxu0 0.0
    %1339 = vmatprep.subr.mxu0 0.0
    %1340 = vmatpush1.msra.mxu0 0.0
    %1341 = vmatprep.subr.mxu0 0.0
    %1342 = vmatpush1.msra.mxu0 %v72
    %1343 = vmatprep.subr.mxu0 0.0
    %1344 = vmatpush1.msra.mxu0 %v71
    %1345 = vmatprep.subr.mxu0 0.0
    %1346 = vmatpush2.msra.mxu0 0.0
    %1347 = vmatprep.subr.mxu0 0.0
    %1348 = vmatpush2.msra.mxu0 0.0
    %1349 = vmatprep.subr.mxu0 0.0
    %1350 = vmatpush2.msra.mxu0 0.0
    %1351 = vmatprep.subr.mxu0 0.0
    %1352 = vmatpush2.msra.mxu0 0.0
    %1353 = vmatprep.subr.mxu0 0.0
    %1354 = vmatpush2.msra.mxu0 0.0
    %1355 = vmatprep.subr.mxu0 0.0
    %1356 = vmatpush2.msra.mxu0 0.0
    %1357 = vmatprep.subr.mxu0 0.0
    %1358 = vmatpush2.msra.mxu0 0.0
    %1359 = vmatprep.subr.mxu0 0.0
    %1360 = vmatpush2.msra.mxu0 0.0
    %1361 = vmatprep.subr.mxu0 0.0
    %1362 = vmatpush2.msra.mxu0 0.0
    %1363 = vmatprep.subr.mxu0 0.0
    %1364 = vmatpush2.msra.mxu0 0.0
    %1365 = vmatprep.subr.mxu0 0.0
    %1366 = vmatpush2.msra.mxu0 0.0
    %1367 = vmatprep.subr.mxu0 0.0
    %1368 = vmatpush2.msra.mxu0 0.0
    %1369 = vmatprep.subr.mxu0 0.0
    %1370 = vmatpush2.msra.mxu0 0.0
    %1371 = vmatprep.subr.mxu0 0.0
    %1372 = vmatpush2.msra.mxu0 0.0
    %1373 = vmatprep.subr.mxu0 0.0
    %1374 = vmatpush2.msra.mxu0 0.0
    %1375 = vmatprep.subr.mxu0 0.0
    %1376 = vmatpush2.msra.mxu0 0.0
    %1377 = vmatprep.mubr.f32.mxu0 0.0
    %1378 = vmatmul.mubr.f32.gmra.mxu0 %v1311
    %v1379 = vpop.f32.mrf.mxu0
    %v1380 = vadd.f32 0.0, %v1379
    %v1381 = vpop.f32.mrf.mxu0
    %1382 = vdwg.mxu0
    %v1384 = vrot.slane %v1380, 6
    %v1386 = vadd.f32 %v1205, %v1384
    %v1387 = vxor.u32 %v1386, 2147483648
    %v1388 = vmul.f32 %v1387, 1.442695
    %v1389 = vpow.pop %v1388
    %v1390 = vadd.f32 %v1389, 1.0
    %v1391 = vrcp.pop %v1390
    %v1392 = vmul.f32 1.0, %v1391
    %v1393 = vtanh.pop %v1386
    %v1395 = vrot.slane %v1301, 6
    %v1397 = vmul.f32 %v1392, %v1395
    %1399 = vrot.lane.b32.xlu0 %v1393, 96
    %v1400 = vpop.permute.xlu0 %1399
    %v1402 = vmul.f32 %v1392, %v1400
    %1404 = vrot.lane.b32.xlu0 %v1402, 16
    %v1405 = vpop.permute.xlu0 %1404
    %v1407 = vadd.f32 %v1397, %v1405
    %v1408 = vtanh.pop %v1407
    %1410 = vrot.lane.b32.xlu0 %v1408, 32
    %v1411 = vpop.permute.xlu0 %1410
    %v1413 = vmul.f32 %v1392, %v1411
    %v1415 = vrot.slane %v1413, 2
    %1416 = vrot.lane.b32.xlu0 %v1415, 80
    %v1417 = vpop.permute.xlu0 %1416
    %v1418 = vsel %vm275, %v1417, 0
    %1420 = vmatprep.subr.mxu0 0.0
    %1421 = vmatpush1.msra.mxu0 0.0
    %1422 = vmatprep.subr.mxu0 0.0
    %1423 = vmatpush1.msra.mxu0 0.0
    %1424 = vmatprep.subr.mxu0 0.0
    %1425 = vmatpush1.msra.mxu0 0.0
    %1426 = vmatprep.subr.mxu0 0.0
    %1427 = vmatpush1.msra.mxu0 0.0
    %1428 = vmatprep.subr.mxu0 0.0
    %1429 = vmatpush1.msra.mxu0 0.0
    %1430 = vmatprep.subr.mxu0 0.0
    %1431 = vmatpush1.msra.mxu0 0.0
    %1432 = vmatprep.subr.mxu0 0.0
    %1433 = vmatpush1.msra.mxu0 0.0
    %1434 = vmatprep.subr.mxu0 0.0
    %1435 = vmatpush1.msra.mxu0 0.0
    %1436 = vmatprep.subr.mxu0 0.0
    %1437 = vmatpush1.msra.mxu0 0.0
    %1438 = vmatprep.subr.mxu0 0.0
    %1439 = vmatpush1.msra.mxu0 0.0
    %1440 = vmatprep.subr.mxu0 0.0
    %1441 = vmatpush1.msra.mxu0 0.0
    %1442 = vmatprep.subr.mxu0 0.0
    %1443 = vmatpush1.msra.mxu0 0.0
    %1444 = vmatprep.subr.mxu0 0.0
    %1445 = vmatpush1.msra.mxu0 0.0
    %1446 = vmatprep.subr.mxu0 0.0
    %1447 = vmatpush1.msra.mxu0 0.0
    %1448 = vmatprep.subr.mxu0 0.0
    %1449 = vmatpush1.msra.mxu0 %v72
    %1450 = vmatprep.subr.mxu0 0.0
    %1451 = vmatpush1.msra.mxu0 %v71
    %1452 = vmatprep.subr.mxu0 0.0
    %1453 = vmatpush2.msra.mxu0 0.0
    %1454 = vmatprep.subr.mxu0 0.0
    %1455 = vmatpush2.msra.mxu0 0.0
    %1456 = vmatprep.subr.mxu0 0.0
    %1457 = vmatpush2.msra.mxu0 0.0
    %1458 = vmatprep.subr.mxu0 0.0
    %1459 = vmatpush2.msra.mxu0 0.0
    %1460 = vmatprep.subr.mxu0 0.0
    %1461 = vmatpush2.msra.mxu0 0.0
    %1462 = vmatprep.subr.mxu0 0.0
    %1463 = vmatpush2.msra.mxu0 0.0
    %1464 = vmatprep.subr.mxu0 0.0
    %1465 = vmatpush2.msra.mxu0 0.0
    %1466 = vmatprep.subr.mxu0 0.0
    %1467 = vmatpush2.msra.mxu0 0.0
    %1468 = vmatprep.subr.mxu0 0.0
    %1469 = vmatpush2.msra.mxu0 0.0
    %1470 = vmatprep.subr.mxu0 0.0
    %1471 = vmatpush2.msra.mxu0 0.0
    %1472 = vmatprep.subr.mxu0 0.0
    %1473 = vmatpush2.msra.mxu0 0.0
    %1474 = vmatprep.subr.mxu0 0.0
    %1475 = vmatpush2.msra.mxu0 0.0
    %1476 = vmatprep.subr.mxu0 0.0
    %1477 = vmatpush2.msra.mxu0 0.0
    %1478 = vmatprep.subr.mxu0 0.0
    %1479 = vmatpush2.msra.mxu0 0.0
    %1480 = vmatprep.subr.mxu0 0.0
    %1481 = vmatpush2.msra.mxu0 0.0
    %1482 = vmatprep.subr.mxu0 0.0
    %1483 = vmatpush2.msra.mxu0 0.0
    %1484 = vmatprep.mubr.f32.mxu0 0.0
    %1485 = vmatmul.mubr.f32.gmra.mxu0 %v1418
    %v1486 = vpop.f32.mrf.mxu0
    %v1487 = vadd.f32 0.0, %v1486
    %v1488 = vpop.f32.mrf.mxu0
    %1489 = vdwg.mxu0
    %v1491 = vrot.slane %v1487, 4
    %v1493 = vadd.f32 %v1205, %v1491
    %v1494 = vxor.u32 %v1493, 2147483648
    %v1495 = vmul.f32 %v1494, 1.442695
    %v1496 = vpow.pop %v1495
    %v1497 = vadd.f32 %v1496, 1.0
    %v1498 = vrcp.pop %v1497
    %v1499 = vmul.f32 1.0, %v1498
    %v1500 = vtanh.pop %v1493
    %v1502 = vrot.slane %v1407, 6
    %v1504 = vmul.f32 %v1499, %v1502
    %1506 = vrot.lane.b32.xlu0 %v1500, 96
    %v1507 = vpop.permute.xlu0 %1506
    %v1509 = vmul.f32 %v1499, %v1507
    %1511 = vrot.lane.b32.xlu0 %v1509, 16
    %v1512 = vpop.permute.xlu0 %1511
    %v1514 = vadd.f32 %v1504, %v1512
    %v1515 = vtanh.pop %v1514
    %1517 = vrot.lane.b32.xlu0 %v1515, 32
    %v1518 = vpop.permute.xlu0 %1517
    %v1520 = vmul.f32 %v1499, %v1518
    %v1522 = vrot.slane %v1520, 4
    %1523 = vrot.lane.b32.xlu0 %v1522, 80
    %v1524 = vpop.permute.xlu0 %1523
    %v1525 = vsel %vm275, %v1524, 0
    %1527 = vmatprep.subr.mxu0 0.0
    %1528 = vmatpush1.msra.mxu0 0.0
    %1529 = vmatprep.subr.mxu0 0.0
    %1530 = vmatpush1.msra.mxu0 0.0
    %1531 = vmatprep.subr.mxu0 0.0
    %1532 = vmatpush1.msra.mxu0 0.0
    %1533 = vmatprep.subr.mxu0 0.0
    %1534 = vmatpush1.msra.mxu0 0.0
    %1535 = vmatprep.subr.mxu0 0.0
    %1536 = vmatpush1.msra.mxu0 0.0
    %1537 = vmatprep.subr.mxu0 0.0
    %1538 = vmatpush1.msra.mxu0 0.0
    %1539 = vmatprep.subr.mxu0 0.0
    %1540 = vmatpush1.msra.mxu0 0.0
    %1541 = vmatprep.subr.mxu0 0.0
    %1542 = vmatpush1.msra.mxu0 0.0
    %1543 = vmatprep.subr.mxu0 0.0
    %1544 = vmatpush1.msra.mxu0 0.0
    %1545 = vmatprep.subr.mxu0 0.0
    %1546 = vmatpush1.msra.mxu0 0.0
    %1547 = vmatprep.subr.mxu0 0.0
    %1548 = vmatpush1.msra.mxu0 0.0
    %1549 = vmatprep.subr.mxu0 0.0
    %1550 = vmatpush1.msra.mxu0 0.0
    %1551 = vmatprep.subr.mxu0 0.0
    %1552 = vmatpush1.msra.mxu0 0.0
    %1553 = vmatprep.subr.mxu0 0.0
    %1554 = vmatpush1.msra.mxu0 0.0
    %1555 = vmatprep.subr.mxu0 0.0
    %1556 = vmatpush1.msra.mxu0 %v72
    %1557 = vmatprep.subr.mxu0 0.0
    %1558 = vmatpush1.msra.mxu0 %v71
    %1559 = vmatprep.subr.mxu0 0.0
    %1560 = vmatpush2.msra.mxu0 0.0
    %1561 = vmatprep.subr.mxu0 0.0
    %1562 = vmatpush2.msra.mxu0 0.0
    %1563 = vmatprep.subr.mxu0 0.0
    %1564 = vmatpush2.msra.mxu0 0.0
    %1565 = vmatprep.subr.mxu0 0.0
    %1566 = vmatpush2.msra.mxu0 0.0
    %1567 = vmatprep.subr.mxu0 0.0
    %1568 = vmatpush2.msra.mxu0 0.0
    %1569 = vmatprep.subr.mxu0 0.0
    %1570 = vmatpush2.msra.mxu0 0.0
    %1571 = vmatprep.subr.mxu0 0.0
    %1572 = vmatpush2.msra.mxu0 0.0
    %1573 = vmatprep.subr.mxu0 0.0
    %1574 = vmatpush2.msra.mxu0 0.0
    %1575 = vmatprep.subr.mxu0 0.0
    %1576 = vmatpush2.msra.mxu0 0.0
    %1577 = vmatprep.subr.mxu0 0.0
    %1578 = vmatpush2.msra.mxu0 0.0
    %1579 = vmatprep.subr.mxu0 0.0
    %1580 = vmatpush2.msra.mxu0 0.0
    %1581 = vmatprep.subr.mxu0 0.0
    %1582 = vmatpush2.msra.mxu0 0.0
    %1583 = vmatprep.subr.mxu0 0.0
    %1584 = vmatpush2.msra.mxu0 0.0
    %1585 = vmatprep.subr.mxu0 0.0
    %1586 = vmatpush2.msra.mxu0 0.0
    %1587 = vmatprep.subr.mxu0 0.0
    %1588 = vmatpush2.msra.mxu0 0.0
    %1589 = vmatprep.subr.mxu0 0.0
    %1590 = vmatpush2.msra.mxu0 0.0
    %1591 = vmatprep.mubr.f32.mxu0 0.0
    %1592 = vmatmul.mubr.f32.gmra.mxu0 %v1525
    %v1593 = vpop.f32.mrf.mxu0
    %v1594 = vadd.f32 0.0, %v1593
    %v1595 = vpop.f32.mrf.mxu0
    %1596 = vdwg.mxu0
    %v1598 = vrot.slane %v1594, 2
    %v1600 = vadd.f32 %v1205, %v1598
    %v1601 = vxor.u32 %v1600, 2147483648
    %v1602 = vmul.f32 %v1601, 1.442695
    %v1603 = vpow.pop %v1602
    %v1604 = vadd.f32 %v1603, 1.0
    %v1605 = vrcp.pop %v1604
    %v1606 = vmul.f32 1.0, %v1605
    %v1607 = vtanh.pop %v1600
    %v1609 = vrot.slane %v1514, 6
    %v1611 = vmul.f32 %v1606, %v1609
    %1613 = vrot.lane.b32.xlu0 %v1607, 96
    %v1614 = vpop.permute.xlu0 %1613
    %v1616 = vmul.f32 %v1606, %v1614
    %1618 = vrot.lane.b32.xlu0 %v1616, 16
    %v1619 = vpop.permute.xlu0 %1618
    %v1621 = vadd.f32 %v1611, %v1619
    %v1622 = vtanh.pop %v1621
    %1624 = vrot.lane.b32.xlu0 %v1622, 32
    %v1625 = vpop.permute.xlu0 %1624
    %v1627 = vmul.f32 %v1606, %v1625
    %v1629 = vrot.slane %v1627, 6
    %1630 = vrot.lane.b32.xlu0 %v1629, 80
    %v1631 = vpop.permute.xlu0 %1630
    %v1632 = vsel %vm275, %v1631, 0
    %1634 = vmatprep.subr.mxu0 0.0
    %1635 = vmatpush1.msra.mxu0 0.0
    %1636 = vmatprep.subr.mxu0 0.0
    %1637 = vmatpush1.msra.mxu0 0.0
    %1638 = vmatprep.subr.mxu0 0.0
    %1639 = vmatpush1.msra.mxu0 0.0
    %1640 = vmatprep.subr.mxu0 0.0
    %1641 = vmatpush1.msra.mxu0 0.0
    %1642 = vmatprep.subr.mxu0 0.0
    %1643 = vmatpush1.msra.mxu0 0.0
    %1644 = vmatprep.subr.mxu0 0.0
    %1645 = vmatpush1.msra.mxu0 0.0
    %1646 = vmatprep.subr.mxu0 0.0
    %1647 = vmatpush1.msra.mxu0 0.0
    %1648 = vmatprep.subr.mxu0 0.0
    %1649 = vmatpush1.msra.mxu0 0.0
    %1650 = vmatprep.subr.mxu0 0.0
    %1651 = vmatpush1.msra.mxu0 0.0
    %1652 = vmatprep.subr.mxu0 0.0
    %1653 = vmatpush1.msra.mxu0 0.0
    %1654 = vmatprep.subr.mxu0 0.0
    %1655 = vmatpush1.msra.mxu0 0.0
    %1656 = vmatprep.subr.mxu0 0.0
    %1657 = vmatpush1.msra.mxu0 0.0
    %1658 = vmatprep.subr.mxu0 0.0
    %1659 = vmatpush1.msra.mxu0 0.0
    %1660 = vmatprep.subr.mxu0 0.0
    %1661 = vmatpush1.msra.mxu0 0.0
    %1662 = vmatprep.subr.mxu0 0.0
    %1663 = vmatpush1.msra.mxu0 %v72
    %1664 = vmatprep.subr.mxu0 0.0
    %1665 = vmatpush1.msra.mxu0 %v71
    %1666 = vmatprep.subr.mxu0 0.0
    %1667 = vmatpush2.msra.mxu0 0.0
    %1668 = vmatprep.subr.mxu0 0.0
    %1669 = vmatpush2.msra.mxu0 0.0
    %1670 = vmatprep.subr.mxu0 0.0
    %1671 = vmatpush2.msra.mxu0 0.0
    %1672 = vmatprep.subr.mxu0 0.0
    %1673 = vmatpush2.msra.mxu0 0.0
    %1674 = vmatprep.subr.mxu0 0.0
    %1675 = vmatpush2.msra.mxu0 0.0
    %1676 = vmatprep.subr.mxu0 0.0
    %1677 = vmatpush2.msra.mxu0 0.0
    %1678 = vmatprep.subr.mxu0 0.0
    %1679 = vmatpush2.msra.mxu0 0.0
    %1680 = vmatprep.subr.mxu0 0.0
    %1681 = vmatpush2.msra.mxu0 0.0
    %1682 = vmatprep.subr.mxu0 0.0
    %1683 = vmatpush2.msra.mxu0 0.0
    %1684 = vmatprep.subr.mxu0 0.0
    %1685 = vmatpush2.msra.mxu0 0.0
    %1686 = vmatprep.subr.mxu0 0.0
    %1687 = vmatpush2.msra.mxu0 0.0
    %1688 = vmatprep.subr.mxu0 0.0
    %1689 = vmatpush2.msra.mxu0 0.0
    %1690 = vmatprep.subr.mxu0 0.0
    %1691 = vmatpush2.msra.mxu0 0.0
    %1692 = vmatprep.subr.mxu0 0.0
    %1693 = vmatpush2.msra.mxu0 0.0
    %1694 = vmatprep.subr.mxu0 0.0
    %1695 = vmatpush2.msra.mxu0 0.0
    %1696 = vmatprep.subr.mxu0 0.0
    %1697 = vmatpush2.msra.mxu0 0.0
    %1698 = vmatprep.mubr.f32.mxu0 0.0
    %1699 = vmatmul.mubr.f32.gmra.mxu0 %v1632
    %v1700 = vpop.f32.mrf.mxu0
    %v1701 = vadd.f32 0.0, %v1700
    %v1702 = vpop.f32.mrf.mxu0
    %1703 = vdwg.mxu0
    %v1704 = vadd.f32 %v1210, %v1701
    %v1705 = vxor.u32 %v1704, 2147483648
    %v1706 = vmul.f32 %v1705, 1.442695
    %v1707 = vpow.pop %v1706
    %v1708 = vadd.f32 %v1707, 1.0
    %v1709 = vrcp.pop %v1708
    %v1710 = vmul.f32 1.0, %v1709
    %v1711 = vtanh.pop %v1704
    %v1713 = vrot.slane %v1621, 6
    %v1715 = vmul.f32 %v1710, %v1713
    %1717 = vrot.lane.b32.xlu0 %v1711, 96
    %v1718 = vpop.permute.xlu0 %1717
    %v1720 = vmul.f32 %v1710, %v1718
    %1722 = vrot.lane.b32.xlu0 %v1720, 16
    %v1723 = vpop.permute.xlu0 %1722
    %v1725 = vadd.f32 %v1715, %v1723
    %v1726 = vtanh.pop %v1725
    %1728 = vrot.lane.b32.xlu0 %v1726, 32
    %v1729 = vpop.permute.xlu0 %1728
    %v1731 = vmul.f32 %v1710, %v1729
    %1733 = vrot.lane.b32.xlu0 %v1731, 80
    %v1734 = vpop.permute.xlu0 %1733
    %v1735 = vsel %vm275, %v1734, 0
    %1737 = vmatprep.subr.mxu0 0.0
    %1738 = vmatpush1.msra.mxu0 0.0
    %1739 = vmatprep.subr.mxu0 0.0
    %1740 = vmatpush1.msra.mxu0 0.0
    %1741 = vmatprep.subr.mxu0 0.0
    %1742 = vmatpush1.msra.mxu0 0.0
    %1743 = vmatprep.subr.mxu0 0.0
    %1744 = vmatpush1.msra.mxu0 0.0
    %1745 = vmatprep.subr.mxu0 0.0
    %1746 = vmatpush1.msra.mxu0 0.0
    %1747 = vmatprep.subr.mxu0 0.0
    %1748 = vmatpush1.msra.mxu0 0.0
    %1749 = vmatprep.subr.mxu0 0.0
    %1750 = vmatpush1.msra.mxu0 0.0
    %1751 = vmatprep.subr.mxu0 0.0
    %1752 = vmatpush1.msra.mxu0 0.0
    %1753 = vmatprep.subr.mxu0 0.0
    %1754 = vmatpush1.msra.mxu0 0.0
    %1755 = vmatprep.subr.mxu0 0.0
    %1756 = vmatpush1.msra.mxu0 0.0
    %1757 = vmatprep.subr.mxu0 0.0
    %1758 = vmatpush1.msra.mxu0 0.0
    %1759 = vmatprep.subr.mxu0 0.0
    %1760 = vmatpush1.msra.mxu0 0.0
    %1761 = vmatprep.subr.mxu0 0.0
    %1762 = vmatpush1.msra.mxu0 0.0
    %1763 = vmatprep.subr.mxu0 0.0
    %1764 = vmatpush1.msra.mxu0 0.0
    %1765 = vmatprep.subr.mxu0 0.0
    %1766 = vmatpush1.msra.mxu0 %v72
    %1767 = vmatprep.subr.mxu0 0.0
    %1768 = vmatpush1.msra.mxu0 %v71
    %1769 = vmatprep.subr.mxu0 0.0
    %1770 = vmatpush2.msra.mxu0 0.0
    %1771 = vmatprep.subr.mxu0 0.0
    %1772 = vmatpush2.msra.mxu0 0.0
    %1773 = vmatprep.subr.mxu0 0.0
    %1774 = vmatpush2.msra.mxu0 0.0
    %1775 = vmatprep.subr.mxu0 0.0
    %1776 = vmatpush2.msra.mxu0 0.0
    %1777 = vmatprep.subr.mxu0 0.0
    %1778 = vmatpush2.msra.mxu0 0.0
    %1779 = vmatprep.subr.mxu0 0.0
    %1780 = vmatpush2.msra.mxu0 0.0
    %1781 = vmatprep.subr.mxu0 0.0
    %1782 = vmatpush2.msra.mxu0 0.0
    %1783 = vmatprep.subr.mxu0 0.0
    %1784 = vmatpush2.msra.mxu0 0.0
    %1785 = vmatprep.subr.mxu0 0.0
    %1786 = vmatpush2.msra.mxu0 0.0
    %1787 = vmatprep.subr.mxu0 0.0
    %1788 = vmatpush2.msra.mxu0 0.0
    %1789 = vmatprep.subr.mxu0 0.0
    %1790 = vmatpush2.msra.mxu0 0.0
    %1791 = vmatprep.subr.mxu0 0.0
    %1792 = vmatpush2.msra.mxu0 0.0
    %1793 = vmatprep.subr.mxu0 0.0
    %1794 = vmatpush2.msra.mxu0 0.0
    %1795 = vmatprep.subr.mxu0 0.0
    %1796 = vmatpush2.msra.mxu0 0.0
    %1797 = vmatprep.subr.mxu0 0.0
    %1798 = vmatpush2.msra.mxu0 0.0
    %1799 = vmatprep.subr.mxu0 0.0
    %1800 = vmatpush2.msra.mxu0 0.0
    %1801 = vmatprep.mubr.f32.mxu0 0.0
    %1802 = vmatmul.mubr.f32.gmra.mxu0 %v1735
    %v1803 = vpop.f32.mrf.mxu0
    %v1804 = vadd.f32 0.0, %v1803
    %v1805 = vpop.f32.mrf.mxu0
    %1806 = vdwg.mxu0
    %v1808 = vrot.slane %v1804, 6
    %v1810 = vadd.f32 %v1210, %v1808
    %v1811 = vxor.u32 %v1810, 2147483648
    %v1812 = vmul.f32 %v1811, 1.442695
    %v1813 = vpow.pop %v1812
    %v1814 = vadd.f32 %v1813, 1.0
    %v1815 = vrcp.pop %v1814
    %v1816 = vmul.f32 1.0, %v1815
    %v1817 = vtanh.pop %v1810
    %v1819 = vrot.slane %v1725, 6
    %v1821 = vmul.f32 %v1816, %v1819
    %1823 = vrot.lane.b32.xlu0 %v1817, 96
    %v1824 = vpop.permute.xlu0 %1823
    %v1826 = vmul.f32 %v1816, %v1824
    %1828 = vrot.lane.b32.xlu0 %v1826, 16
    %v1829 = vpop.permute.xlu0 %1828
    %v1831 = vadd.f32 %v1821, %v1829
    %v1832 = vtanh.pop %v1831
    %1834 = vrot.lane.b32.xlu0 %v1832, 32
    %v1835 = vpop.permute.xlu0 %1834
    %v1837 = vmul.f32 %v1816, %v1835
    %v1839 = vrot.slane %v1837, 2
    %1840 = vrot.lane.b32.xlu0 %v1839, 80
    %v1841 = vpop.permute.xlu0 %1840
    %v1842 = vsel %vm275, %v1841, 0
    %1844 = vmatprep.subr.mxu0 0.0
    %1845 = vmatpush1.msra.mxu0 0.0
    %1846 = vmatprep.subr.mxu0 0.0
    %1847 = vmatpush1.msra.mxu0 0.0
    %1848 = vmatprep.subr.mxu0 0.0
    %1849 = vmatpush1.msra.mxu0 0.0
    %1850 = vmatprep.subr.mxu0 0.0
    %1851 = vmatpush1.msra.mxu0 0.0
    %1852 = vmatprep.subr.mxu0 0.0
    %1853 = vmatpush1.msra.mxu0 0.0
    %1854 = vmatprep.subr.mxu0 0.0
    %1855 = vmatpush1.msra.mxu0 0.0
    %1856 = vmatprep.subr.mxu0 0.0
    %1857 = vmatpush1.msra.mxu0 0.0
    %1858 = vmatprep.subr.mxu0 0.0
    %1859 = vmatpush1.msra.mxu0 0.0
    %1860 = vmatprep.subr.mxu0 0.0
    %1861 = vmatpush1.msra.mxu0 0.0
    %1862 = vmatprep.subr.mxu0 0.0
    %1863 = vmatpush1.msra.mxu0 0.0
    %1864 = vmatprep.subr.mxu0 0.0
    %1865 = vmatpush1.msra.mxu0 0.0
    %1866 = vmatprep.subr.mxu0 0.0
    %1867 = vmatpush1.msra.mxu0 0.0
    %1868 = vmatprep.subr.mxu0 0.0
    %1869 = vmatpush1.msra.mxu0 0.0
    %1870 = vmatprep.subr.mxu0 0.0
    %1871 = vmatpush1.msra.mxu0 0.0
    %1872 = vmatprep.subr.mxu0 0.0
    %1873 = vmatpush1.msra.mxu0 %v72
    %1874 = vmatprep.subr.mxu0 0.0
    %1875 = vmatpush1.msra.mxu0 %v71
    %1876 = vmatprep.subr.mxu0 0.0
    %1877 = vmatpush2.msra.mxu0 0.0
    %1878 = vmatprep.subr.mxu0 0.0
    %1879 = vmatpush2.msra.mxu0 0.0
    %1880 = vmatprep.subr.mxu0 0.0
    %1881 = vmatpush2.msra.mxu0 0.0
    %1882 = vmatprep.subr.mxu0 0.0
    %1883 = vmatpush2.msra.mxu0 0.0
    %1884 = vmatprep.subr.mxu0 0.0
    %1885 = vmatpush2.msra.mxu0 0.0
    %1886 = vmatprep.subr.mxu0 0.0
    %1887 = vmatpush2.msra.mxu0 0.0
    %1888 = vmatprep.subr.mxu0 0.0
    %1889 = vmatpush2.msra.mxu0 0.0
    %1890 = vmatprep.subr.mxu0 0.0
    %1891 = vmatpush2.msra.mxu0 0.0
    %1892 = vmatprep.subr.mxu0 0.0
    %1893 = vmatpush2.msra.mxu0 0.0
    %1894 = vmatprep.subr.mxu0 0.0
    %1895 = vmatpush2.msra.mxu0 0.0
    %1896 = vmatprep.subr.mxu0 0.0
    %1897 = vmatpush2.msra.mxu0 0.0
    %1898 = vmatprep.subr.mxu0 0.0
    %1899 = vmatpush2.msra.mxu0 0.0
    %1900 = vmatprep.subr.mxu0 0.0
    %1901 = vmatpush2.msra.mxu0 0.0
    %1902 = vmatprep.subr.mxu0 0.0
    %1903 = vmatpush2.msra.mxu0 0.0
    %1904 = vmatprep.subr.mxu0 0.0
    %1905 = vmatpush2.msra.mxu0 0.0
    %1906 = vmatprep.subr.mxu0 0.0
    %1907 = vmatpush2.msra.mxu0 0.0
    %1908 = vmatprep.mubr.f32.mxu0 0.0
    %1909 = vmatmul.mubr.f32.gmra.mxu0 %v1842
    %v1910 = vpop.f32.mrf.mxu0
    %v1911 = vadd.f32 0.0, %v1910
    %v1912 = vpop.f32.mrf.mxu0
    %1913 = vdwg.mxu0
    %v1915 = vrot.slane %v1911, 4
    %v1917 = vadd.f32 %v1210, %v1915
    %v1918 = vxor.u32 %v1917, 2147483648
    %v1919 = vmul.f32 %v1918, 1.442695
    %v1920 = vpow.pop %v1919
    %v1921 = vadd.f32 %v1920, 1.0
    %v1922 = vrcp.pop %v1921
    %v1923 = vmul.f32 1.0, %v1922
    %v1924 = vtanh.pop %v1917
    %v1926 = vrot.slane %v1831, 6
    %v1928 = vmul.f32 %v1923, %v1926
    %1930 = vrot.lane.b32.xlu0 %v1924, 96
    %v1931 = vpop.permute.xlu0 %1930
    %v1933 = vmul.f32 %v1923, %v1931
    %1935 = vrot.lane.b32.xlu0 %v1933, 16
    %v1936 = vpop.permute.xlu0 %1935
    %v1938 = vadd.f32 %v1928, %v1936
    %v1939 = vtanh.pop %v1938
    %1941 = vrot.lane.b32.xlu0 %v1939, 32
    %v1942 = vpop.permute.xlu0 %1941
    %v1944 = vmul.f32 %v1923, %v1942
    %v1946 = vrot.slane %v1944, 4
    %1947 = vrot.lane.b32.xlu0 %v1946, 80
    %v1948 = vpop.permute.xlu0 %1947
    %v1949 = vsel %vm275, %v1948, 0
    %1951 = vmatprep.subr.mxu0 0.0
    %1952 = vmatpush1.msra.mxu0 0.0
    %1953 = vmatprep.subr.mxu0 0.0
    %1954 = vmatpush1.msra.mxu0 0.0
    %1955 = vmatprep.subr.mxu0 0.0
    %1956 = vmatpush1.msra.mxu0 0.0
    %1957 = vmatprep.subr.mxu0 0.0
    %1958 = vmatpush1.msra.mxu0 0.0
    %1959 = vmatprep.subr.mxu0 0.0
    %1960 = vmatpush1.msra.mxu0 0.0
    %1961 = vmatprep.subr.mxu0 0.0
    %1962 = vmatpush1.msra.mxu0 0.0
    %1963 = vmatprep.subr.mxu0 0.0
    %1964 = vmatpush1.msra.mxu0 0.0
    %1965 = vmatprep.subr.mxu0 0.0
    %1966 = vmatpush1.msra.mxu0 0.0
    %1967 = vmatprep.subr.mxu0 0.0
    %1968 = vmatpush1.msra.mxu0 0.0
    %1969 = vmatprep.subr.mxu0 0.0
    %1970 = vmatpush1.msra.mxu0 0.0
    %1971 = vmatprep.subr.mxu0 0.0
    %1972 = vmatpush1.msra.mxu0 0.0
    %1973 = vmatprep.subr.mxu0 0.0
    %1974 = vmatpush1.msra.mxu0 0.0
    %1975 = vmatprep.subr.mxu0 0.0
    %1976 = vmatpush1.msra.mxu0 0.0
    %1977 = vmatprep.subr.mxu0 0.0
    %1978 = vmatpush1.msra.mxu0 0.0
    %1979 = vmatprep.subr.mxu0 0.0
    %1980 = vmatpush1.msra.mxu0 %v72
    %1981 = vmatprep.subr.mxu0 0.0
    %1982 = vmatpush1.msra.mxu0 %v71
    %1983 = vmatprep.subr.mxu0 0.0
    %1984 = vmatpush2.msra.mxu0 0.0
    %1985 = vmatprep.subr.mxu0 0.0
    %1986 = vmatpush2.msra.mxu0 0.0
    %1987 = vmatprep.subr.mxu0 0.0
    %1988 = vmatpush2.msra.mxu0 0.0
    %1989 = vmatprep.subr.mxu0 0.0
    %1990 = vmatpush2.msra.mxu0 0.0
    %1991 = vmatprep.subr.mxu0 0.0
    %1992 = vmatpush2.msra.mxu0 0.0
    %1993 = vmatprep.subr.mxu0 0.0
    %1994 = vmatpush2.msra.mxu0 0.0
    %1995 = vmatprep.subr.mxu0 0.0
    %1996 = vmatpush2.msra.mxu0 0.0
    %1997 = vmatprep.subr.mxu0 0.0
    %1998 = vmatpush2.msra.mxu0 0.0
    %1999 = vmatprep.subr.mxu0 0.0
    %2000 = vmatpush2.msra.mxu0 0.0
    %2001 = vmatprep.subr.mxu0 0.0
    %2002 = vmatpush2.msra.mxu0 0.0
    %2003 = vmatprep.subr.mxu0 0.0
    %2004 = vmatpush2.msra.mxu0 0.0
    %2005 = vmatprep.subr.mxu0 0.0
    %2006 = vmatpush2.msra.mxu0 0.0
    %2007 = vmatprep.subr.mxu0 0.0
    %2008 = vmatpush2.msra.mxu0 0.0
    %2009 = vmatprep.subr.mxu0 0.0
    %2010 = vmatpush2.msra.mxu0 0.0
    %2011 = vmatprep.subr.mxu0 0.0
    %2012 = vmatpush2.msra.mxu0 0.0
    %2013 = vmatprep.subr.mxu0 0.0
    %2014 = vmatpush2.msra.mxu0 0.0
    %2015 = vmatprep.mubr.f32.mxu0 0.0
    %2016 = vmatmul.mubr.f32.gmra.mxu0 %v1949
    %v2017 = vpop.f32.mrf.mxu0
    %v2018 = vadd.f32 0.0, %v2017
    %v2019 = vpop.f32.mrf.mxu0
    %2020 = vdwg.mxu0
    %v2022 = vrot.slane %v2018, 2
    %v2024 = vadd.f32 %v1210, %v2022
    %v2025 = vxor.u32 %v2024, 2147483648
    %v2026 = vmul.f32 %v2025, 1.442695
    %v2027 = vpow.pop %v2026
    %v2028 = vadd.f32 %v2027, 1.0
    %v2029 = vrcp.pop %v2028
    %v2030 = vmul.f32 1.0, %v2029
    %v2031 = vtanh.pop %v2024
    %v2033 = vrot.slane %v1938, 6
    %v2035 = vmul.f32 %v2030, %v2033
    %2037 = vrot.lane.b32.xlu0 %v2031, 96
    %v2038 = vpop.permute.xlu0 %2037
    %v2040 = vmul.f32 %v2030, %v2038
    %2042 = vrot.lane.b32.xlu0 %v2040, 16
    %v2043 = vpop.permute.xlu0 %2042
    %v2045 = vadd.f32 %v2035, %v2043
    %v2046 = vtanh.pop %v2045
    %2048 = vrot.lane.b32.xlu0 %v2046, 32
    %v2049 = vpop.permute.xlu0 %2048
    %v2051 = vmul.f32 %v2030, %v2049
    %v2052 = vlaneseq
    %v2053 = vshrl.u32 %v2052, 7
    %v2054 = vsub.s32 0, %v2053
    %v2055 = vrot.slane %v77, %v2054
    %v2057 = vrot.slane %v2051, 6
    %2058 = vrot.lane.b32.xlu0 %v2057, 80
    %v2059 = vpop.permute.xlu0 %2058
    %v2060 = vsel %vm275, %v2059, 0
    %2062 = vmatprep.subr.mxu0 0.0
    %2063 = vmatpush1.msra.mxu0 0.0
    %2064 = vmatprep.subr.mxu0 0.0
    %2065 = vmatpush1.msra.mxu0 0.0
    %2066 = vmatprep.subr.mxu0 0.0
    %2067 = vmatpush1.msra.mxu0 0.0
    %2068 = vmatprep.subr.mxu0 0.0
    %2069 = vmatpush1.msra.mxu0 0.0
    %2070 = vmatprep.subr.mxu0 0.0
    %2071 = vmatpush1.msra.mxu0 0.0
    %2072 = vmatprep.subr.mxu0 0.0
    %2073 = vmatpush1.msra.mxu0 0.0
    %2074 = vmatprep.subr.mxu0 0.0
    %2075 = vmatpush1.msra.mxu0 0.0
    %2076 = vmatprep.subr.mxu0 0.0
    %2077 = vmatpush1.msra.mxu0 0.0
    %2078 = vmatprep.subr.mxu0 0.0
    %2079 = vmatpush1.msra.mxu0 0.0
    %2080 = vmatprep.subr.mxu0 0.0
    %2081 = vmatpush1.msra.mxu0 0.0
    %2082 = vmatprep.subr.mxu0 0.0
    %2083 = vmatpush1.msra.mxu0 0.0
    %2084 = vmatprep.subr.mxu0 0.0
    %2085 = vmatpush1.msra.mxu0 0.0
    %2086 = vmatprep.subr.mxu0 0.0
    %2087 = vmatpush1.msra.mxu0 0.0
    %2088 = vmatprep.subr.mxu0 0.0
    %2089 = vmatpush1.msra.mxu0 0.0
    %2090 = vmatprep.subr.mxu0 0.0
    %2091 = vmatpush1.msra.mxu0 %v74
    %2092 = vmatprep.subr.mxu0 0.0
    %2093 = vmatpush1.msra.mxu0 %v73
    %2094 = vmatprep.subr.mxu0 0.0
    %2095 = vmatpush2.msra.mxu0 0.0
    %2096 = vmatprep.subr.mxu0 0.0
    %2097 = vmatpush2.msra.mxu0 0.0
    %2098 = vmatprep.subr.mxu0 0.0
    %2099 = vmatpush2.msra.mxu0 0.0
    %2100 = vmatprep.subr.mxu0 0.0
    %2101 = vmatpush2.msra.mxu0 0.0
    %2102 = vmatprep.subr.mxu0 0.0
    %2103 = vmatpush2.msra.mxu0 0.0
    %2104 = vmatprep.subr.mxu0 0.0
    %2105 = vmatpush2.msra.mxu0 0.0
    %2106 = vmatprep.subr.mxu0 0.0
    %2107 = vmatpush2.msra.mxu0 0.0
    %2108 = vmatprep.subr.mxu0 0.0
    %2109 = vmatpush2.msra.mxu0 0.0
    %2110 = vmatprep.subr.mxu0 0.0
    %2111 = vmatpush2.msra.mxu0 0.0
    %2112 = vmatprep.subr.mxu0 0.0
    %2113 = vmatpush2.msra.mxu0 0.0
    %2114 = vmatprep.subr.mxu0 0.0
    %2115 = vmatpush2.msra.mxu0 0.0
    %2116 = vmatprep.subr.mxu0 0.0
    %2117 = vmatpush2.msra.mxu0 0.0
    %2118 = vmatprep.subr.mxu0 0.0
    %2119 = vmatpush2.msra.mxu0 0.0
    %2120 = vmatprep.subr.mxu0 0.0
    %2121 = vmatpush2.msra.mxu0 0.0
    %2122 = vmatprep.subr.mxu0 0.0
    %2123 = vmatpush2.msra.mxu0 0.0
    %2124 = vmatprep.subr.mxu0 0.0
    %2125 = vmatpush2.msra.mxu0 0.0
    %2126 = vmatprep.mubr.f32.mxu0 0.0
    %2127 = vmatmul.mubr.f32.gmra.mxu0 %v2060
    %v2128 = vpop.f32.mrf.mxu0
    %v2129 = vadd.f32 %v2055, %v2128
    %v2130 = vpop.f32.mrf.mxu0
    %2131 = vdwg.mxu0
    %vm2132 = vcmask 713728
    %2133 = vst.msk [vmem:[#allocation9] sm:$0x3] %vm2132, %v2129
    // Predicated region
    $region26: #{lstm_forward.1} parent=1 // pred_check
      _
    $region27: #{lstm_forward.1} parent=1 // pred_check_branch
      %2135 = sbr.rel (0) target = $region29
    $region28: #{lstm_forward.1} parent=1 // pred_region
      %s2137 = ssub.s32 32, 32
      %2138 = vsyncadd [#allocation4], %s2137
      %s2140 = sshll.u32 [#allocation9], 4
      %s2141 = int_to_ptr.vmem [resolvable:$true] %s2140
      %2143 = dma.vmem_to_hbm [thread:$0]  %s2141, 32, %s3, [#allocation4]
    $region29: #{lstm_forward.1} parent=1 // pred_fallthru
      _
    // Predicated region
    $region30: #{lstm_forward.1} parent=1 // pred_check
      _
    $region31: #{lstm_forward.1} parent=1 // pred_check_branch
      %2145 = sbr.rel (0) target = $region33
    $region32: #{lstm_forward.1} parent=1 // pred_region
      %2146 = dma.done [#allocation4], 32
    $region33: #{lstm_forward.1} parent=1 // pred_fallthru
      _
    %2147 = vsyncpa [#allocation3], 1
    %2148 = vsyncpa [#allocation8], 1
    %2149 = vsyncpa [#allocation4], 1
    %2150 = vsyncpa [#allocation5], 1

</llo_original>
